<compile_context>
chip_gen: v7x
topology: tpu7x:2x2x1
jax: 0.10.0
libtpu: 0.0.40
codegen_flags: <defaults>
</compile_context>

<pallas_src>
import jax
import jax.numpy as jnp
from jax.experimental import pallas as pl
from jax.experimental.pallas import tpu as pltpu

EPS = 1e-5


# ---------------------------------------------------------------------------
# Fused kernel
# ---------------------------------------------------------------------------
def _resblock_kernel(x_ref, b1_ref, b2_ref, g1_ref, be1_ref, g2_ref, be2_ref,
                     fold_ref, expand_ref, out_ref, pad_ref, st_ref, cs_ref):
    # x_ref    : (H, N*W*C)      activations; batch, width, channel on lanes
    # b*_ref   : (3, NWC, NWC)   banded conv weights, block-diagonal over N
    # g*/be*   : (1, C)          BatchNorm gamma / beta
    # fold_ref : (NWC, C)        lane -> per-channel fold (sums)
    # expand   : (C, NWC)        per-channel -> lane broadcast
    # pad_ref  : (H+2, NWC)      y-padded activation VMEM scratch
    # st_ref   : (2, NWC)        [sum; sum_sq] staging for the fused fold dot
    # cs_ref   : (2, C)          [scale; shift] staging for the fused expand dot
    H, NWC = x_ref.shape
    C = g1_ref.shape[-1]
    inv_cnt = float(C) / float(H * NWC)          # == 1 / (N*H*W)

    fold = fold_ref[...]
    expand = expand_ref[...]

    def conv3x3(b_ref):
        # 3 MXU matmuls (one per ky); the band matrix folds the kx taps, the
        # x-direction zero padding, the ci contraction and the batch
        # block-diagonal, so there are no per-tap slices / relayouts and no
        # VMEM accumulator round trip (partials stay in vregs).
        acc = jnp.dot(pad_ref[0:H, :], b_ref[0],
                      preferred_element_type=jnp.float32)
        acc = acc + jnp.dot(pad_ref[1:1 + H, :], b_ref[1],
                            preferred_element_type=jnp.float32)
        acc = acc + jnp.dot(pad_ref[2:2 + H, :], b_ref[2],
                            preferred_element_type=jnp.float32)
        return acc

    def bn(acc, gamma, beta):
        # Single-pass training-mode BN: sum + sum-of-squares, biased variance,
        # fp32 stats.  Fold/expand each fused into one M=2 matmul.
        st_ref[0:1, :] = jnp.sum(acc, axis=0, keepdims=True)        # (1, NWC)
        st_ref[1:2, :] = jnp.sum(acc * acc, axis=0, keepdims=True)  # (1, NWC)
        s12c = jnp.dot(st_ref[...], fold,
                       preferred_element_type=jnp.float32)          # (2, C)
        mean = s12c[0:1, :] * inv_cnt
        var = s12c[1:2, :] * inv_cnt - mean * mean
        scale_c = gamma * jax.lax.rsqrt(var + EPS)                   # (1, C)
        shift_c = beta - mean * scale_c                              # (1, C)
        cs_ref[0:1, :] = scale_c
        cs_ref[1:2, :] = shift_c
        ss = jnp.dot(cs_ref[...], expand,
                     preferred_element_type=jnp.float32)             # (2, NWC)
        return acc * ss[0:1, :] + ss[1:2, :]

    # ---- in-kernel zero padding: only the two border rows ever hold zeros;
    #      the interior rows are fully overwritten in both stages ------------
    zrow = jnp.zeros((1, NWC), jnp.float32)
    pad_ref[0:1, :] = zrow
    pad_ref[H + 1:H + 2, :] = zrow

    # ---- stage 1: conv1 -> BN1 (batch stats) -> ReLU -----------------------
    pad_ref[1:1 + H, :] = x_ref[...]
    h = jnp.maximum(bn(conv3x3(b1_ref), g1_ref[...], be1_ref[...]), 0.0)

    # ---- stage 2: re-pad h in VMEM, conv2 -> BN2 -> +residual -> ReLU ------
    pad_ref[1:1 + H, :] = h              # borders are still zero
    o = bn(conv3x3(b2_ref), g2_ref[...], be2_ref[...]) + x_ref[...]
    out_ref[...] = jnp.maximum(o, 0.0)


# ---------------------------------------------------------------------------
# Weight / constant preparation (hoisted: run once per weight update)
# ---------------------------------------------------------------------------
def _make_bands(w, W, N):
    """PyTorch OIHW (Cout, Cin, 3, 3) -> (3, N*W*Cin, N*W*Cout) banded matrix,
    block-diagonal over the batch N.

    band[ky][xin*Cin + ci, xout*Cout + co] = w[co, ci, ky, xin - xout + 1]
    when xin - xout + 1 in {0,1,2}, else 0 (absent rows == x zero padding).
    Hard-codes k=3, stride=1, pad=1 (the con3x3 config of the module).
    """
    Cout, Cin = int(w.shape[0]), int(w.shape[1])
    wt = jnp.transpose(w, (2, 3, 1, 0)).astype(jnp.float32)    # (ky, kx, ci, co)
    xin = jnp.arange(W)[:, None]
    xout = jnp.arange(W)[None, :]
    dx = xin - xout + 1                                        # (W, W)
    valid = ((dx >= 0) & (dx <= 2)).astype(jnp.float32)
    blocks = wt[:, jnp.clip(dx, 0, 2)]                         # (3, W, W, Ci, Co)
    blocks = blocks * valid[None, :, :, None, None]
    blocks = jnp.transpose(blocks, (0, 1, 3, 2, 4))            # (3, W, Ci, W, Co)
    band = blocks.reshape(3, W * Cin, W * Cout)
    eye_n = jnp.eye(N, dtype=jnp.float32)
    bd = jnp.einsum("kab,nm->knamb", band, eye_n)              # block-diag over N
    return bd.reshape(3, N * W * Cin, N * W * Cout)


def _make_fold_expand(N, W, C):
    ch = jnp.arange(N * W * C) % C
    fold = (ch[:, None] == jnp.arange(C)[None, :]).astype(jnp.float32)
    return fold, fold.T                                        # (NWC,C), (C,NWC)


def prepare_resblock_params(w1, w2, g1, b1, g2, b2, N, W):
    """Band / fold / expand construction — once per weight update, not per call."""
    C = int(w1.shape[1])
    fold, expand = _make_fold_expand(N, W, C)
    return dict(
        band1=_make_bands(w1, W, N),
        band2=_make_bands(w2, W, N),
        g1=jnp.asarray(g1, jnp.float32).reshape(1, C),
        b1=jnp.asarray(b1, jnp.float32).reshape(1, C),
        g2=jnp.asarray(g2, jnp.float32).reshape(1, C),
        b2=jnp.asarray(b2, jnp.float32).reshape(1, C),
        fold=fold, expand=expand)


# ---------------------------------------------------------------------------
# Wrappers
# ---------------------------------------------------------------------------
def _residual_block_packed(xf, params):
    H, NWC = xf.shape
    C = params["g1"].shape[-1]
    vmem = pl.BlockSpec(memory_space=pltpu.MemorySpace.VMEM)
    return pl.pallas_call(
        _resblock_kernel,
        out_shape=jax.ShapeDtypeStruct((H, NWC), jnp.float32),
        in_specs=[vmem] * 9,
        out_specs=vmem,
        scratch_shapes=[
            pltpu.VMEM((H + 2, NWC), jnp.float32),   # y-padded activations
            pltpu.VMEM((2, NWC), jnp.float32),       # BN [sum; sum_sq] staging
            pltpu.VMEM((2, C), jnp.float32),         # BN [scale; shift] staging
        ],
        compiler_params=pltpu.CompilerParams(
            vmem_limit_bytes=32 * 1024 * 1024),      # safe on v5e/v6e/v7x
    )(xf, params["band1"], params["band2"], params["g1"], params["b1"],
      params["g2"], params["b2"], params["fold"], params["expand"])


def residual_block(x_nchw, params):
    """x_nchw: (N, C, H, W) f32; params from prepare_resblock_params."""
    N, C, H, W = x_nchw.shape
    # NCHW -> (H, N*W*C): layout plumbing only, to match the PyTorch calling
    # convention; a real model keeps the packed lane-dense layout end-to-end.
    xf = jnp.transpose(x_nchw, (2, 0, 3, 1)).astype(jnp.float32)
    xf = xf.reshape(H, N * W * C)
    out_flat = _residual_block_packed(xf, params)
    return jnp.transpose(out_flat.reshape(H, N, W, C), (1, 3, 0, 2))


# ---------------------------------------------------------------------------
# Pure-JAX reference (correctness check)
# ---------------------------------------------------------------------------
def ref_residual_block(x, w1, w2, g1, b1, g2, b2):
    def conv(x, w):
        return jax.lax.conv_general_dilated(
            x, w, window_strides=(1, 1), padding=((1, 1), (1, 1)),
            dimension_numbers=("NCHW", "OIHW", "NCHW"))

    def bn(y, g, b):
        m = jnp.mean(y, axis=(0, 2, 3), keepdims=True)
        v = jnp.mean((y - m) ** 2, axis=(0, 2, 3), keepdims=True)
        return ((y - m) * jax.lax.rsqrt(v + EPS) * g.reshape(1, -1, 1, 1)
                + b.reshape(1, -1, 1, 1))

    out = jax.nn.relu(bn(conv(x, w1), g1, b1))
    out = bn(conv(out, w2), g2, b2) + x    # downsample=None -> residual = x
    return jax.nn.relu(out)


# ---------------------------------------------------------------------------
if __name__ == "__main__":
    N, C, H, W = 2, 4, 16, 16   # in_channels == out_channels (downsample=None)

    key = jax.random.PRNGKey(0)
    kx, kw1, kw2 = jax.random.split(key, 3)
    x = jax.random.normal(kx, (N, C, H, W), jnp.float32)
    w1 = jax.random.normal(kw1, (C, C, 3, 3), jnp.float32) * 0.1
    w2 = jax.random.normal(kw2, (C, C, 3, 3), jnp.float32) * 0.1
    g1 = jnp.ones((C,), jnp.float32)   # BatchNorm2d default gamma
    b1 = jnp.zeros((C,), jnp.float32)  # BatchNorm2d default beta
    g2 = jnp.ones((C,), jnp.float32)
    b2 = jnp.zeros((C,), jnp.float32)

    # Hoisted prep: once per weight update, outside the per-call path.
    params = prepare_resblock_params(w1, w2, g1, b1, g2, b2, N, W)

    fwd = jax.jit(residual_block)
    out = jax.block_until_ready(fwd(x, params))

    ref = ref_residual_block(x, w1, w2, g1, b1, g2, b2)
    assert out.shape == (N, C, H, W)
    assert jnp.allclose(out, ref, rtol=1e-4, atol=1e-4), (
        float(jnp.max(jnp.abs(out - ref))))

    print("KERNEL_OK")
</pallas_src>

<mosaic_0001>
module attributes {stable_mosaic.version = 11 : i64} {
  func.func @_resblock_kernel(%arg0: memref<16x128xf32, #tpu.memory_space<vmem>>, %arg1: memref<3x128x128xf32, #tpu.memory_space<vmem>>, %arg2: memref<3x128x128xf32, #tpu.memory_space<vmem>>, %arg3: memref<1x4xf32, #tpu.memory_space<vmem>>, %arg4: memref<1x4xf32, #tpu.memory_space<vmem>>, %arg5: memref<1x4xf32, #tpu.memory_space<vmem>>, %arg6: memref<1x4xf32, #tpu.memory_space<vmem>>, %arg7: memref<128x4xf32, #tpu.memory_space<vmem>>, %arg8: memref<4x128xf32, #tpu.memory_space<vmem>>, %arg9: memref<16x128xf32, #tpu.memory_space<vmem>>, %arg10: memref<18x128xf32, #tpu.memory_space<vmem>>, %arg11: memref<2x128xf32, #tpu.memory_space<vmem>>, %arg12: memref<2x4xf32, #tpu.memory_space<vmem>>) attributes {dimension_semantics = [], scalar_prefetch = 0 : i64, scratch_operands = 3 : i64, tpu.core_type = #tpu.core_type<tc>} {
    %c0 = arith.constant 0 : index
    %c0_0 = arith.constant 0 : index
    %0 = vector.load %arg7[%c0, %c0_0] : memref<128x4xf32, #tpu.memory_space<vmem>>, vector<128x4xf32>
    %c0_1 = arith.constant 0 : index
    %c0_2 = arith.constant 0 : index
    %1 = vector.load %arg8[%c0_1, %c0_2] : memref<4x128xf32, #tpu.memory_space<vmem>>, vector<4x128xf32>
    %cst = arith.constant 0.000000e+00 : f32
    %2 = vector.broadcast %cst : f32 to vector<1x128xf32>
    %c0_3 = arith.constant 0 : index
    %c0_4 = arith.constant 0 : index
    %3 = vector.load %arg10[%c0_3, %c0_4] : memref<18x128xf32, #tpu.memory_space<vmem>>, vector<1x128xf32>
    tpu.vector_store %arg10[%c0_3, %c0_4], %2 {strides = array<i32>} : memref<18x128xf32, #tpu.memory_space<vmem>>, vector<1x128xf32>,
    %c17 = arith.constant 17 : index
    %c0_5 = arith.constant 0 : index
    %4 = vector.load %arg10[%c17, %c0_5] : memref<18x128xf32, #tpu.memory_space<vmem>>, vector<1x128xf32>
    tpu.vector_store %arg10[%c17, %c0_5], %2 {strides = array<i32>} : memref<18x128xf32, #tpu.memory_space<vmem>>, vector<1x128xf32>,
    %c0_6 = arith.constant 0 : index
    %c0_7 = arith.constant 0 : index
    %5 = vector.load %arg0[%c0_6, %c0_7] : memref<16x128xf32, #tpu.memory_space<vmem>>, vector<16x128xf32>
    %c1 = arith.constant 1 : index
    %c0_8 = arith.constant 0 : index
    %6 = vector.load %arg10[%c1, %c0_8] : memref<18x128xf32, #tpu.memory_space<vmem>>, vector<16x128xf32>
    tpu.vector_store %arg10[%c1, %c0_8], %5 {strides = array<i32>} : memref<18x128xf32, #tpu.memory_space<vmem>>, vector<16x128xf32>,
    %c0_9 = arith.constant 0 : index
    %c0_10 = arith.constant 0 : index
    %7 = vector.load %arg10[%c0_9, %c0_10] : memref<18x128xf32, #tpu.memory_space<vmem>>, vector<16x128xf32>
    %c0_11 = arith.constant 0 : index
    %c0_12 = arith.constant 0 : index
    %c0_13 = arith.constant 0 : index
    %8 = vector.load %arg1[%c0_11, %c0_12, %c0_13] : memref<3x128x128xf32, #tpu.memory_space<vmem>>, vector<1x128x128xf32>
    %9 = vector.shape_cast %8 : vector<1x128x128xf32> to vector<128x128xf32>
    %cst_14 = arith.constant dense<0.000000e+00> : vector<16x128xf32>
    %10 = tpu.matmul %7, %9, %cst_14 {dimension_numbers = #tpu.dot_dimension_numbers<[1], [0], [0], [1], [0, 0, 1, 1], [], []>} : vector<16x128xf32>, vector<128x128xf32>, vector<16x128xf32> -> vector<16x128xf32>
    %c1_15 = arith.constant 1 : index
    %c0_16 = arith.constant 0 : index
    %11 = vector.load %arg10[%c1_15, %c0_16] : memref<18x128xf32, #tpu.memory_space<vmem>>, vector<16x128xf32>
    %c1_17 = arith.constant 1 : index
    %c0_18 = arith.constant 0 : index
    %c0_19 = arith.constant 0 : index
    %12 = vector.load %arg1[%c1_17, %c0_18, %c0_19] : memref<3x128x128xf32, #tpu.memory_space<vmem>>, vector<1x128x128xf32>
    %13 = vector.shape_cast %12 : vector<1x128x128xf32> to vector<128x128xf32>
    %cst_20 = arith.constant dense<0.000000e+00> : vector<16x128xf32>
    %14 = tpu.matmul %11, %13, %cst_20 {dimension_numbers = #tpu.dot_dimension_numbers<[1], [0], [0], [1], [0, 0, 1, 1], [], []>} : vector<16x128xf32>, vector<128x128xf32>, vector<16x128xf32> -> vector<16x128xf32>
    %15 = arith.addf %10, %14 : vector<16x128xf32>
    %c2 = arith.constant 2 : index
    %c0_21 = arith.constant 0 : index
    %16 = vector.load %arg10[%c2, %c0_21] : memref<18x128xf32, #tpu.memory_space<vmem>>, vector<16x128xf32>
    %c2_22 = arith.constant 2 : index
    %c0_23 = arith.constant 0 : index
    %c0_24 = arith.constant 0 : index
    %17 = vector.load %arg1[%c2_22, %c0_23, %c0_24] : memref<3x128x128xf32, #tpu.memory_space<vmem>>, vector<1x128x128xf32>
    %18 = vector.shape_cast %17 : vector<1x128x128xf32> to vector<128x128xf32>
    %cst_25 = arith.constant dense<0.000000e+00> : vector<16x128xf32>
    %19 = tpu.matmul %16, %18, %cst_25 {dimension_numbers = #tpu.dot_dimension_numbers<[1], [0], [0], [1], [0, 0, 1, 1], [], []>} : vector<16x128xf32>, vector<128x128xf32>, vector<16x128xf32> -> vector<16x128xf32>
    %20 = arith.addf %15, %19 : vector<16x128xf32>
    %c0_26 = arith.constant 0 : index
    %c0_27 = arith.constant 0 : index
    %21 = vector.load %arg3[%c0_26, %c0_27] : memref<1x4xf32, #tpu.memory_space<vmem>>, vector<1x4xf32>
    %c0_28 = arith.constant 0 : index
    %c0_29 = arith.constant 0 : index
    %22 = vector.load %arg4[%c0_28, %c0_29] : memref<1x4xf32, #tpu.memory_space<vmem>>, vector<1x4xf32>
    %cst_30 = arith.constant dense<0.000000e+00> : vector<128xf32>
    %23 = vector.multi_reduction <add>, %20, %cst_30 [0] : vector<16x128xf32> to vector<128xf32>
    %24 = vector.shape_cast %23 : vector<128xf32> to vector<1x128xf32>
    %c0_31 = arith.constant 0 : index
    %c0_32 = arith.constant 0 : index
    %25 = vector.load %arg11[%c0_31, %c0_32] : memref<2x128xf32, #tpu.memory_space<vmem>>, vector<1x128xf32>
    tpu.vector_store %arg11[%c0_31, %c0_32], %24 {strides = array<i32>} : memref<2x128xf32, #tpu.memory_space<vmem>>, vector<1x128xf32>,
    %26 = arith.mulf %20, %20 : vector<16x128xf32>
    %cst_33 = arith.constant dense<0.000000e+00> : vector<128xf32>
    %27 = vector.multi_reduction <add>, %26, %cst_33 [0] : vector<16x128xf32> to vector<128xf32>
    %28 = vector.shape_cast %27 : vector<128xf32> to vector<1x128xf32>
    %c1_34 = arith.constant 1 : index
    %c0_35 = arith.constant 0 : index
    %29 = vector.load %arg11[%c1_34, %c0_35] : memref<2x128xf32, #tpu.memory_space<vmem>>, vector<1x128xf32>
    tpu.vector_store %arg11[%c1_34, %c0_35], %28 {strides = array<i32>} : memref<2x128xf32, #tpu.memory_space<vmem>>, vector<1x128xf32>,
    %c0_36 = arith.constant 0 : index
    %c0_37 = arith.constant 0 : index
    %30 = vector.load %arg11[%c0_36, %c0_37] : memref<2x128xf32, #tpu.memory_space<vmem>>, vector<2x128xf32>
    %cst_38 = arith.constant dense<0.000000e+00> : vector<2x4xf32>
    %31 = tpu.matmul %30, %0, %cst_38 {dimension_numbers = #tpu.dot_dimension_numbers<[1], [0], [0], [1], [0, 0, 1, 1], [], []>} : vector<2x128xf32>, vector<128x4xf32>, vector<2x4xf32> -> vector<2x4xf32>
    %32 = vector.extract_strided_slice %31 {offsets = [0, 0], sizes = [1, 4], strides = [1, 1]} : vector<2x4xf32> to vector<1x4xf32>
    %cst_39 = arith.constant 0.001953125 : f32
    %33 = vector.broadcast %cst_39 : f32 to vector<1x4xf32>
    %34 = arith.mulf %32, %33 : vector<1x4xf32>
    %35 = vector.extract_strided_slice %31 {offsets = [1, 0], sizes = [1, 4], strides = [1, 1]} : vector<2x4xf32> to vector<1x4xf32>
    %cst_40 = arith.constant 0.001953125 : f32
    %36 = vector.broadcast %cst_40 : f32 to vector<1x4xf32>
    %37 = arith.mulf %35, %36 : vector<1x4xf32>
    %38 = arith.mulf %34, %34 : vector<1x4xf32>
    %39 = arith.subf %37, %38 : vector<1x4xf32>
    %cst_41 = arith.constant 9.99999974E-6 : f32
    %40 = vector.broadcast %cst_41 : f32 to vector<1x4xf32>
    %41 = arith.addf %39, %40 : vector<1x4xf32>
    %42 = math.rsqrt %41 : vector<1x4xf32>
    %43 = arith.mulf %21, %42 : vector<1x4xf32>
    %44 = arith.mulf %34, %43 : vector<1x4xf32>
    %45 = arith.subf %22, %44 : vector<1x4xf32>
    %c0_42 = arith.constant 0 : index
    %c0_43 = arith.constant 0 : index
    %46 = vector.load %arg12[%c0_42, %c0_43] : memref<2x4xf32, #tpu.memory_space<vmem>>, vector<1x4xf32>
    tpu.vector_store %arg12[%c0_42, %c0_43], %43 {strides = array<i32>} : memref<2x4xf32, #tpu.memory_space<vmem>>, vector<1x4xf32>,
    %c1_44 = arith.constant 1 : index
    %c0_45 = arith.constant 0 : index
    %47 = vector.load %arg12[%c1_44, %c0_45] : memref<2x4xf32, #tpu.memory_space<vmem>>, vector<1x4xf32>
    tpu.vector_store %arg12[%c1_44, %c0_45], %45 {strides = array<i32>} : memref<2x4xf32, #tpu.memory_space<vmem>>, vector<1x4xf32>,
    %c0_46 = arith.constant 0 : index
    %c0_47 = arith.constant 0 : index
    %48 = vector.load %arg12[%c0_46, %c0_47] : memref<2x4xf32, #tpu.memory_space<vmem>>, vector<2x4xf32>
    %cst_48 = arith.constant dense<0.000000e+00> : vector<2x128xf32>
    %49 = tpu.matmul %48, %1, %cst_48 {dimension_numbers = #tpu.dot_dimension_numbers<[1], [0], [0], [1], [0, 0, 1, 1], [], []>} : vector<2x4xf32>, vector<4x128xf32>, vector<2x128xf32> -> vector<2x128xf32>
    %50 = vector.extract_strided_slice %49 {offsets = [0, 0], sizes = [1, 128], strides = [1, 1]} : vector<2x128xf32> to vector<1x128xf32>
    %51 = vector.broadcast %50 : vector<1x128xf32> to vector<16x128xf32>
    %52 = arith.mulf %20, %51 : vector<16x128xf32>
    %53 = vector.extract_strided_slice %49 {offsets = [1, 0], sizes = [1, 128], strides = [1, 1]} : vector<2x128xf32> to vector<1x128xf32>
    %54 = vector.broadcast %53 : vector<1x128xf32> to vector<16x128xf32>
    %55 = arith.addf %52, %54 : vector<16x128xf32>
    %cst_49 = arith.constant 0.000000e+00 : f32
    %56 = vector.broadcast %cst_49 : f32 to vector<16x128xf32>
    %57 = arith.maximumf %55, %56 : vector<16x128xf32>
    %c1_50 = arith.constant 1 : index
    %c0_51 = arith.constant 0 : index
    %58 = vector.load %arg10[%c1_50, %c0_51] : memref<18x128xf32, #tpu.memory_space<vmem>>, vector<16x128xf32>
    tpu.vector_store %arg10[%c1_50, %c0_51], %57 {strides = array<i32>} : memref<18x128xf32, #tpu.memory_space<vmem>>, vector<16x128xf32>,
    %c0_52 = arith.constant 0 : index
    %c0_53 = arith.constant 0 : index
    %59 = vector.load %arg10[%c0_52, %c0_53] : memref<18x128xf32, #tpu.memory_space<vmem>>, vector<16x128xf32>
    %c0_54 = arith.constant 0 : index
    %c0_55 = arith.constant 0 : index
    %c0_56 = arith.constant 0 : index
    %60 = vector.load %arg2[%c0_54, %c0_55, %c0_56] : memref<3x128x128xf32, #tpu.memory_space<vmem>>, vector<1x128x128xf32>
    %61 = vector.shape_cast %60 : vector<1x128x128xf32> to vector<128x128xf32>
    %cst_57 = arith.constant dense<0.000000e+00> : vector<16x128xf32>
    %62 = tpu.matmul %59, %61, %cst_57 {dimension_numbers = #tpu.dot_dimension_numbers<[1], [0], [0], [1], [0, 0, 1, 1], [], []>} : vector<16x128xf32>, vector<128x128xf32>, vector<16x128xf32> -> vector<16x128xf32>
    %c1_58 = arith.constant 1 : index
    %c0_59 = arith.constant 0 : index
    %63 = vector.load %arg10[%c1_58, %c0_59] : memref<18x128xf32, #tpu.memory_space<vmem>>, vector<16x128xf32>
    %c1_60 = arith.constant 1 : index
    %c0_61 = arith.constant 0 : index
    %c0_62 = arith.constant 0 : index
    %64 = vector.load %arg2[%c1_60, %c0_61, %c0_62] : memref<3x128x128xf32, #tpu.memory_space<vmem>>, vector<1x128x128xf32>
    %65 = vector.shape_cast %64 : vector<1x128x128xf32> to vector<128x128xf32>
    %cst_63 = arith.constant dense<0.000000e+00> : vector<16x128xf32>
    %66 = tpu.matmul %63, %65, %cst_63 {dimension_numbers = #tpu.dot_dimension_numbers<[1], [0], [0], [1], [0, 0, 1, 1], [], []>} : vector<16x128xf32>, vector<128x128xf32>, vector<16x128xf32> -> vector<16x128xf32>
    %67 = arith.addf %62, %66 : vector<16x128xf32>
    %c2_64 = arith.constant 2 : index
    %c0_65 = arith.constant 0 : index
    %68 = vector.load %arg10[%c2_64, %c0_65] : memref<18x128xf32, #tpu.memory_space<vmem>>, vector<16x128xf32>
    %c2_66 = arith.constant 2 : index
    %c0_67 = arith.constant 0 : index
    %c0_68 = arith.constant 0 : index
    %69 = vector.load %arg2[%c2_66, %c0_67, %c0_68] : memref<3x128x128xf32, #tpu.memory_space<vmem>>, vector<1x128x128xf32>
    %70 = vector.shape_cast %69 : vector<1x128x128xf32> to vector<128x128xf32>
    %cst_69 = arith.constant dense<0.000000e+00> : vector<16x128xf32>
    %71 = tpu.matmul %68, %70, %cst_69 {dimension_numbers = #tpu.dot_dimension_numbers<[1], [0], [0], [1], [0, 0, 1, 1], [], []>} : vector<16x128xf32>, vector<128x128xf32>, vector<16x128xf32> -> vector<16x128xf32>
    %72 = arith.addf %67, %71 : vector<16x128xf32>
    %c0_70 = arith.constant 0 : index
    %c0_71 = arith.constant 0 : index
    %73 = vector.load %arg5[%c0_70, %c0_71] : memref<1x4xf32, #tpu.memory_space<vmem>>, vector<1x4xf32>
    %c0_72 = arith.constant 0 : index
    %c0_73 = arith.constant 0 : index
    %74 = vector.load %arg6[%c0_72, %c0_73] : memref<1x4xf32, #tpu.memory_space<vmem>>, vector<1x4xf32>
    %cst_74 = arith.constant dense<0.000000e+00> : vector<128xf32>
    %75 = vector.multi_reduction <add>, %72, %cst_74 [0] : vector<16x128xf32> to vector<128xf32>
    %76 = vector.shape_cast %75 : vector<128xf32> to vector<1x128xf32>
    %c0_75 = arith.constant 0 : index
    %c0_76 = arith.constant 0 : index
    %77 = vector.load %arg11[%c0_75, %c0_76] : memref<2x128xf32, #tpu.memory_space<vmem>>, vector<1x128xf32>
    tpu.vector_store %arg11[%c0_75, %c0_76], %76 {strides = array<i32>} : memref<2x128xf32, #tpu.memory_space<vmem>>, vector<1x128xf32>,
    %78 = arith.mulf %72, %72 : vector<16x128xf32>
    %cst_77 = arith.constant dense<0.000000e+00> : vector<128xf32>
    %79 = vector.multi_reduction <add>, %78, %cst_77 [0] : vector<16x128xf32> to vector<128xf32>
    %80 = vector.shape_cast %79 : vector<128xf32> to vector<1x128xf32>
    %c1_78 = arith.constant 1 : index
    %c0_79 = arith.constant 0 : index
    %81 = vector.load %arg11[%c1_78, %c0_79] : memref<2x128xf32, #tpu.memory_space<vmem>>, vector<1x128xf32>
    tpu.vector_store %arg11[%c1_78, %c0_79], %80 {strides = array<i32>} : memref<2x128xf32, #tpu.memory_space<vmem>>, vector<1x128xf32>,
    %c0_80 = arith.constant 0 : index
    %c0_81 = arith.constant 0 : index
    %82 = vector.load %arg11[%c0_80, %c0_81] : memref<2x128xf32, #tpu.memory_space<vmem>>, vector<2x128xf32>
    %cst_82 = arith.constant dense<0.000000e+00> : vector<2x4xf32>
    %83 = tpu.matmul %82, %0, %cst_82 {dimension_numbers = #tpu.dot_dimension_numbers<[1], [0], [0], [1], [0, 0, 1, 1], [], []>} : vector<2x128xf32>, vector<128x4xf32>, vector<2x4xf32> -> vector<2x4xf32>
    %84 = vector.extract_strided_slice %83 {offsets = [0, 0], sizes = [1, 4], strides = [1, 1]} : vector<2x4xf32> to vector<1x4xf32>
    %cst_83 = arith.constant 0.001953125 : f32
    %85 = vector.broadcast %cst_83 : f32 to vector<1x4xf32>
    %86 = arith.mulf %84, %85 : vector<1x4xf32>
    %87 = vector.extract_strided_slice %83 {offsets = [1, 0], sizes = [1, 4], strides = [1, 1]} : vector<2x4xf32> to vector<1x4xf32>
    %cst_84 = arith.constant 0.001953125 : f32
    %88 = vector.broadcast %cst_84 : f32 to vector<1x4xf32>
    %89 = arith.mulf %87, %88 : vector<1x4xf32>
    %90 = arith.mulf %86, %86 : vector<1x4xf32>
    %91 = arith.subf %89, %90 : vector<1x4xf32>
    %cst_85 = arith.constant 9.99999974E-6 : f32
    %92 = vector.broadcast %cst_85 : f32 to vector<1x4xf32>
    %93 = arith.addf %91, %92 : vector<1x4xf32>
    %94 = math.rsqrt %93 : vector<1x4xf32>
    %95 = arith.mulf %73, %94 : vector<1x4xf32>
    %96 = arith.mulf %86, %95 : vector<1x4xf32>
    %97 = arith.subf %74, %96 : vector<1x4xf32>
    %c0_86 = arith.constant 0 : index
    %c0_87 = arith.constant 0 : index
    %98 = vector.load %arg12[%c0_86, %c0_87] : memref<2x4xf32, #tpu.memory_space<vmem>>, vector<1x4xf32>
    tpu.vector_store %arg12[%c0_86, %c0_87], %95 {strides = array<i32>} : memref<2x4xf32, #tpu.memory_space<vmem>>, vector<1x4xf32>,
    %c1_88 = arith.constant 1 : index
    %c0_89 = arith.constant 0 : index
    %99 = vector.load %arg12[%c1_88, %c0_89] : memref<2x4xf32, #tpu.memory_space<vmem>>, vector<1x4xf32>
    tpu.vector_store %arg12[%c1_88, %c0_89], %97 {strides = array<i32>} : memref<2x4xf32, #tpu.memory_space<vmem>>, vector<1x4xf32>,
    %c0_90 = arith.constant 0 : index
    %c0_91 = arith.constant 0 : index
    %100 = vector.load %arg12[%c0_90, %c0_91] : memref<2x4xf32, #tpu.memory_space<vmem>>, vector<2x4xf32>
    %cst_92 = arith.constant dense<0.000000e+00> : vector<2x128xf32>
    %101 = tpu.matmul %100, %1, %cst_92 {dimension_numbers = #tpu.dot_dimension_numbers<[1], [0], [0], [1], [0, 0, 1, 1], [], []>} : vector<2x4xf32>, vector<4x128xf32>, vector<2x128xf32> -> vector<2x128xf32>
    %102 = vector.extract_strided_slice %101 {offsets = [0, 0], sizes = [1, 128], strides = [1, 1]} : vector<2x128xf32> to vector<1x128xf32>
    %103 = vector.broadcast %102 : vector<1x128xf32> to vector<16x128xf32>
    %104 = arith.mulf %72, %103 : vector<16x128xf32>
    %105 = vector.extract_strided_slice %101 {offsets = [1, 0], sizes = [1, 128], strides = [1, 1]} : vector<2x128xf32> to vector<1x128xf32>
    %106 = vector.broadcast %105 : vector<1x128xf32> to vector<16x128xf32>
    %107 = arith.addf %104, %106 : vector<16x128xf32>
    %c0_93 = arith.constant 0 : index
    %c0_94 = arith.constant 0 : index
    %108 = vector.load %arg0[%c0_93, %c0_94] : memref<16x128xf32, #tpu.memory_space<vmem>>, vector<16x128xf32>
    %109 = arith.addf %107, %108 : vector<16x128xf32>
    %cst_95 = arith.constant 0.000000e+00 : f32
    %110 = vector.broadcast %cst_95 : f32 to vector<16x128xf32>
    %111 = arith.maximumf %109, %110 : vector<16x128xf32>
    %c0_96 = arith.constant 0 : index
    %c0_97 = arith.constant 0 : index
    %112 = vector.load %arg9[%c0_96, %c0_97] : memref<16x128xf32, #tpu.memory_space<vmem>>, vector<16x128xf32>
    tpu.vector_store %arg9[%c0_96, %c0_97], %111 {strides = array<i32>} : memref<16x128xf32, #tpu.memory_space<vmem>>, vector<16x128xf32>,
    return
  }
}

</mosaic_0001>

<llo_original>
// kernel: residual_block.1
$region0: #{residual_block.1}
  #allocation0 [shape = 'u32[]', space=smem, size = 0x4, offset = 0x4, fixed_abs, tag = 'smem constant byte address 0x4 - core index']
  #allocation1 [shape = 'u32[144,128]{1,0:T(1,128)}', space=vmem, size = 0x12000, scoped, tag = 'internal scratch']
  #allocation2 [shape = 'f32[18,128]{1,0:T(8,128)}', space=vmem, size = 0x3000, scoped, tag = 'scratch operand']
  #allocation3 [shape = 'f32[2,128]{1,0:T(2,128)}', space=vmem, size = 0x400, scoped, tag = 'scratch operand']
  #allocation4 [shape = 'f32[2,4]{1,0:T(2,128)}', space=vmem, size = 0x400, scoped, tag = 'scratch operand']
  %s0 = inlined_call_operand.vmem [shape: f32[16,128], index: 0, kind: input, shape index: {}]
  %s1 = inlined_call_operand.vmem [shape: f32[3,128,128], index: 1, kind: input, shape index: {}]
  %s2 = inlined_call_operand.hbm [shape: f32[3,128,128], index: 2, kind: input, shape index: {}]
  %s3 = inlined_call_operand.vmem [shape: f32[1,4], index: 3, kind: input, shape index: {}]
  %s4 = inlined_call_operand.vmem [shape: f32[1,4], index: 4, kind: input, shape index: {}]
  %s5 = inlined_call_operand.vmem [shape: f32[1,4], index: 5, kind: input, shape index: {}]
  %s6 = inlined_call_operand.vmem [shape: f32[1,4], index: 6, kind: input, shape index: {}]
  %s7 = inlined_call_operand.vmem [shape: f32[128,4], index: 7, kind: input, shape index: {}]
  %s8 = inlined_call_operand.vmem [shape: f32[4,128], index: 8, kind: input, shape index: {}]
  %s9 = inlined_call_operand.vmem [shape: f32[16,128], index: 9, kind: output, shape index: {}]
  %s10 = sld [smem:[#allocation0]]
  $region50: #{residual_block.1} parent=0
    _
  %s12 = ssub.s32 1, %s10
  %s13 = scalar_select 0, %s12, %s10
  $region1: #{residual_block.1} parent=0
    #allocation5 [shape = 'u8[196608]{0}', space=vmem, size = 0x30000, scoped, tag = 'input window, operand 2, single buffered']
    #allocation6 [shape = 's32[1]{0}', space=sflag, size = 0x4, scoped, tag = 'scoped memory for residual_block.1']
    %14 = vsyncpa [#allocation6], 0
    // Predicated region
    $region2: #{residual_block.1} parent=1 // pred_check
      _
    $region3: #{residual_block.1} parent=1 // pred_check_branch
      %16 = sbr.rel (0) target = $region5
    $region4: #{residual_block.1} parent=1 // pred_region
      _
    $region5: #{residual_block.1} parent=1 // pred_fallthru
      _
    // Predicated region
    $region6: #{residual_block.1} parent=1 // pred_check
      _
    $region7: #{residual_block.1} parent=1 // pred_check_branch
      %18 = sbr.rel (0) target = $region9
    $region8: #{residual_block.1} parent=1 // pred_region
      _
    $region9: #{residual_block.1} parent=1 // pred_fallthru
      _
    // Predicated region
    $region10: #{residual_block.1} parent=1 // pred_check
      _
    $region11: #{residual_block.1} parent=1 // pred_check_branch
      %20 = sbr.rel (0) target = $region13
    $region12: #{residual_block.1} parent=1 // pred_region
      %s22 = ssub.s32 6144, 6144
      %23 = vsyncadd [#allocation6], %s22
      %s24 = sshll.u32 [#allocation5], 4
      %s25 = int_to_ptr.vmem [resolvable:$true] %s24
      %30 = dma.hbm_to_vmem [thread:$0]  %s2, 6144, %s25, [#allocation6], 128, 128, 8
    $region13: #{residual_block.1} parent=1 // pred_fallthru
      _
    // Predicated region
    $region14: #{residual_block.1} parent=1 // pred_check
      _
    $region15: #{residual_block.1} parent=1 // pred_check_branch
      %32 = sbr.rel (0) target = $region17
    $region16: #{residual_block.1} parent=1 // pred_region
      _
    $region17: #{residual_block.1} parent=1 // pred_fallthru
      _
    // Predicated region
    $region18: #{residual_block.1} parent=1 // pred_check
      _
    $region19: #{residual_block.1} parent=1 // pred_check_branch
      %34 = sbr.rel (0) target = $region21
    $region20: #{residual_block.1} parent=1 // pred_region
      _
    $region21: #{residual_block.1} parent=1 // pred_fallthru
      _
    // Predicated region
    $region22: #{residual_block.1} parent=1 // pred_check
      _
    $region23: #{residual_block.1} parent=1 // pred_check_branch
      %36 = sbr.rel (0) target = $region25
    $region24: #{residual_block.1} parent=1 // pred_region
      _
    $region25: #{residual_block.1} parent=1 // pred_fallthru
      _
    // Predicated region
    $region26: #{residual_block.1} parent=1 // pred_check
      _
    $region27: #{residual_block.1} parent=1 // pred_check_branch
      %38 = sbr.rel (0) target = $region29
    $region28: #{residual_block.1} parent=1 // pred_region
      _
    $region29: #{residual_block.1} parent=1 // pred_fallthru
      _
    // Predicated region
    $region30: #{residual_block.1} parent=1 // pred_check
      _
    $region31: #{residual_block.1} parent=1 // pred_check_branch
      %40 = sbr.rel (0) target = $region33
    $region32: #{residual_block.1} parent=1 // pred_region
      _
    $region33: #{residual_block.1} parent=1 // pred_fallthru
      _
    // Predicated region
    $region34: #{residual_block.1} parent=1 // pred_check
      _
    $region35: #{residual_block.1} parent=1 // pred_check_branch
      %42 = sbr.rel (0) target = $region37
    $region36: #{residual_block.1} parent=1 // pred_region
      _
    $region37: #{residual_block.1} parent=1 // pred_fallthru
      _
    // Predicated region
    $region38: #{residual_block.1} parent=1 // pred_check
      _
    $region39: #{residual_block.1} parent=1 // pred_check_branch
      %44 = sbr.rel (0) target = $region41
    $region40: #{residual_block.1} parent=1 // pred_region
      %45 = dma.done [#allocation6], 6144
    $region41: #{residual_block.1} parent=1 // pred_fallthru
      _
    %v46 = vld [vmem:[%s7] sm:$0xff]
    %v47 = vld [vmem:[%s7 + $0x8] sm:$0xff]
    %v48 = vld [vmem:[%s7 + $0x10] sm:$0xff]
    %v49 = vld [vmem:[%s7 + $0x18] sm:$0xff]
    %v50 = vld [vmem:[%s7 + $0x20] sm:$0xff]
    %v51 = vld [vmem:[%s7 + $0x28] sm:$0xff]
    %v52 = vld [vmem:[%s7 + $0x30] sm:$0xff]
    %v53 = vld [vmem:[%s7 + $0x38] sm:$0xff]
    %v54 = vld [vmem:[%s7 + $0x40] sm:$0xff]
    %v55 = vld [vmem:[%s7 + $0x48] sm:$0xff]
    %v56 = vld [vmem:[%s7 + $0x50] sm:$0xff]
    %v57 = vld [vmem:[%s7 + $0x58] sm:$0xff]
    %v58 = vld [vmem:[%s7 + $0x60] sm:$0xff]
    %v59 = vld [vmem:[%s7 + $0x68] sm:$0xff]
    %v60 = vld [vmem:[%s7 + $0x70] sm:$0xff]
    %v61 = vld [vmem:[%s7 + $0x78] sm:$0xff]
    %v62 = vld [vmem:[%s8] sm:$0xf]
    %63 = vst [vmem:[#allocation2] sm:$0x1] 0.0
    %64 = vst [vmem:[#allocation2 + $0x11] sm:$0x1] 0.0
    %v65 = vld [vmem:[%s0] sm:$0xff]
    %v66 = vld [vmem:[%s0 + $0x8] sm:$0xff]
    %67 = vst [vmem:[#allocation2 + $0x1] sm:$0xff] %v65
    %68 = vst [vmem:[#allocation2 + $0x9] sm:$0xff] %v66
    %v69 = vld [vmem:[#allocation2] sm:$0xff]
    %v70 = vld [vmem:[#allocation2 + $0x8] sm:$0xff]
    %v71 = vld [vmem:[%s1] sm:$0xff]
    %v72 = vld [vmem:[%s1 + $0x8] sm:$0xff]
    %v73 = vld [vmem:[%s1 + $0x10] sm:$0xff]
    %v74 = vld [vmem:[%s1 + $0x18] sm:$0xff]
    %v75 = vld [vmem:[%s1 + $0x20] sm:$0xff]
    %v76 = vld [vmem:[%s1 + $0x28] sm:$0xff]
    %v77 = vld [vmem:[%s1 + $0x30] sm:$0xff]
    %v78 = vld [vmem:[%s1 + $0x38] sm:$0xff]
    %v79 = vld [vmem:[%s1 + $0x40] sm:$0xff]
    %v80 = vld [vmem:[%s1 + $0x48] sm:$0xff]
    %v81 = vld [vmem:[%s1 + $0x50] sm:$0xff]
    %v82 = vld [vmem:[%s1 + $0x58] sm:$0xff]
    %v83 = vld [vmem:[%s1 + $0x60] sm:$0xff]
    %v84 = vld [vmem:[%s1 + $0x68] sm:$0xff]
    %v85 = vld [vmem:[%s1 + $0x70] sm:$0xff]
    %v86 = vld [vmem:[%s1 + $0x78] sm:$0xff]
    %v87 = vld [vmem:[#allocation2 + $0x1] sm:$0xff]
    %v88 = vld [vmem:[#allocation2 + $0x9] sm:$0xff]
    %s89 = scalar_lea.vmem %s1, 128
    %v90 = vld [vmem:[%s89] sm:$0xff]
    %v91 = vld [vmem:[%s89 + $0x8] sm:$0xff]
    %v92 = vld [vmem:[%s89 + $0x10] sm:$0xff]
    %v93 = vld [vmem:[%s89 + $0x18] sm:$0xff]
    %v94 = vld [vmem:[%s89 + $0x20] sm:$0xff]
    %v95 = vld [vmem:[%s89 + $0x28] sm:$0xff]
    %v96 = vld [vmem:[%s89 + $0x30] sm:$0xff]
    %v97 = vld [vmem:[%s89 + $0x38] sm:$0xff]
    %v98 = vld [vmem:[%s89 + $0x40] sm:$0xff]
    %v99 = vld [vmem:[%s89 + $0x48] sm:$0xff]
    %v100 = vld [vmem:[%s89 + $0x50] sm:$0xff]
    %v101 = vld [vmem:[%s89 + $0x58] sm:$0xff]
    %v102 = vld [vmem:[%s89 + $0x60] sm:$0xff]
    %v103 = vld [vmem:[%s89 + $0x68] sm:$0xff]
    %v104 = vld [vmem:[%s89 + $0x70] sm:$0xff]
    %v105 = vld [vmem:[%s89 + $0x78] sm:$0xff]
    %106 = vmatprep.subr.mxu0 0.0
    %107 = vmatpush1.msra.mxu0 %v90
    %108 = vmatprep.subr.mxu0 0.0
    %109 = vmatpush1.msra.mxu0 %v91
    %110 = vmatprep.subr.mxu0 0.0
    %111 = vmatpush1.msra.mxu0 %v92
    %112 = vmatprep.subr.mxu0 0.0
    %113 = vmatpush1.msra.mxu0 %v93
    %114 = vmatprep.subr.mxu0 0.0
    %115 = vmatpush1.msra.mxu0 %v94
    %116 = vmatprep.subr.mxu0 0.0
    %117 = vmatpush1.msra.mxu0 %v95
    %118 = vmatprep.subr.mxu0 0.0
    %119 = vmatpush1.msra.mxu0 %v96
    %120 = vmatprep.subr.mxu0 0.0
    %121 = vmatpush1.msra.mxu0 %v97
    %122 = vmatprep.subr.mxu0 0.0
    %123 = vmatpush1.msra.mxu0 %v98
    %124 = vmatprep.subr.mxu0 0.0
    %125 = vmatpush1.msra.mxu0 %v99
    %126 = vmatprep.subr.mxu0 0.0
    %127 = vmatpush1.msra.mxu0 %v100
    %128 = vmatprep.subr.mxu0 0.0
    %129 = vmatpush1.msra.mxu0 %v101
    %130 = vmatprep.subr.mxu0 0.0
    %131 = vmatpush1.msra.mxu0 %v102
    %132 = vmatprep.subr.mxu0 0.0
    %133 = vmatpush1.msra.mxu0 %v103
    %134 = vmatprep.subr.mxu0 0.0
    %135 = vmatpush1.msra.mxu0 %v104
    %136 = vmatprep.subr.mxu0 0.0
    %137 = vmatpush1.msra.mxu0 %v105
    %138 = vmatprep.subr.mxu0 0.0
    %139 = vmatpush1.msra.mxu0 0.0
    %140 = vmatprep.subr.mxu0 0.0
    %141 = vmatpush1.msra.mxu0 0.0
    %142 = vmatprep.subr.mxu0 0.0
    %143 = vmatpush1.msra.mxu0 0.0
    %144 = vmatprep.subr.mxu0 0.0
    %145 = vmatpush1.msra.mxu0 0.0
    %146 = vmatprep.subr.mxu0 0.0
    %147 = vmatpush1.msra.mxu0 0.0
    %148 = vmatprep.subr.mxu0 0.0
    %149 = vmatpush1.msra.mxu0 0.0
    %150 = vmatprep.subr.mxu0 0.0
    %151 = vmatpush1.msra.mxu0 0.0
    %152 = vmatprep.subr.mxu0 0.0
    %153 = vmatpush1.msra.mxu0 0.0
    %154 = vmatprep.subr.mxu0 0.0
    %155 = vmatpush1.msra.mxu0 0.0
    %156 = vmatprep.subr.mxu0 0.0
    %157 = vmatpush1.msra.mxu0 0.0
    %158 = vmatprep.subr.mxu0 0.0
    %159 = vmatpush1.msra.mxu0 0.0
    %160 = vmatprep.subr.mxu0 0.0
    %161 = vmatpush1.msra.mxu0 0.0
    %162 = vmatprep.subr.mxu0 0.0
    %163 = vmatpush1.msra.mxu0 0.0
    %164 = vmatprep.subr.mxu0 0.0
    %165 = vmatpush1.msra.mxu0 0.0
    %166 = vmatprep.subr.mxu0 0.0
    %167 = vmatpush1.msra.mxu0 0.0
    %168 = vmatprep.subr.mxu0 0.0
    %169 = vmatpush1.msra.mxu0 0.0
    %170 = vmatprep.mubr.f32.mxu0 0.0
    %171 = vmatmul.mubr.f32.gmra.mrb[0].mxu0 %v87
    %v172 = vpop.f32.mrb[0].mxu0
    %v173 = vadd.f32 0.0, %v172
    %v174 = vpop.f32.mrb[0].mxu0
    %175 = vmatprep.mubr.f32.mxu0 0.0
    %176 = vmatmul.mubr.f32.gmra.mrb[0].mxu0 %v88
    %v177 = vpop.f32.mrb[0].mxu0
    %v178 = vadd.f32 0.0, %v177
    %v179 = vpop.f32.mrb[0].mxu0
    %180 = vdwg.mxu0
    %181 = vmatprep.subr.mxu0 0.0
    %182 = vmatpush1.msra.mxu0 %v71
    %183 = vmatprep.subr.mxu0 0.0
    %184 = vmatpush1.msra.mxu0 %v72
    %185 = vmatprep.subr.mxu0 0.0
    %186 = vmatpush1.msra.mxu0 %v73
    %187 = vmatprep.subr.mxu0 0.0
    %188 = vmatpush1.msra.mxu0 %v74
    %189 = vmatprep.subr.mxu0 0.0
    %190 = vmatpush1.msra.mxu0 %v75
    %191 = vmatprep.subr.mxu0 0.0
    %192 = vmatpush1.msra.mxu0 %v76
    %193 = vmatprep.subr.mxu0 0.0
    %194 = vmatpush1.msra.mxu0 %v77
    %195 = vmatprep.subr.mxu0 0.0
    %196 = vmatpush1.msra.mxu0 %v78
    %197 = vmatprep.subr.mxu0 0.0
    %198 = vmatpush1.msra.mxu0 %v79
    %199 = vmatprep.subr.mxu0 0.0
    %200 = vmatpush1.msra.mxu0 %v80
    %201 = vmatprep.subr.mxu0 0.0
    %202 = vmatpush1.msra.mxu0 %v81
    %203 = vmatprep.subr.mxu0 0.0
    %204 = vmatpush1.msra.mxu0 %v82
    %205 = vmatprep.subr.mxu0 0.0
    %206 = vmatpush1.msra.mxu0 %v83
    %207 = vmatprep.subr.mxu0 0.0
    %208 = vmatpush1.msra.mxu0 %v84
    %209 = vmatprep.subr.mxu0 0.0
    %210 = vmatpush1.msra.mxu0 %v85
    %211 = vmatprep.subr.mxu0 0.0
    %212 = vmatpush1.msra.mxu0 %v86
    %213 = vmatprep.subr.mxu0 0.0
    %214 = vmatpush1.msra.mxu0 0.0
    %215 = vmatprep.subr.mxu0 0.0
    %216 = vmatpush1.msra.mxu0 0.0
    %217 = vmatprep.subr.mxu0 0.0
    %218 = vmatpush1.msra.mxu0 0.0
    %219 = vmatprep.subr.mxu0 0.0
    %220 = vmatpush1.msra.mxu0 0.0
    %221 = vmatprep.subr.mxu0 0.0
    %222 = vmatpush1.msra.mxu0 0.0
    %223 = vmatprep.subr.mxu0 0.0
    %224 = vmatpush1.msra.mxu0 0.0
    %225 = vmatprep.subr.mxu0 0.0
    %226 = vmatpush1.msra.mxu0 0.0
    %227 = vmatprep.subr.mxu0 0.0
    %228 = vmatpush1.msra.mxu0 0.0
    %229 = vmatprep.subr.mxu0 0.0
    %230 = vmatpush1.msra.mxu0 0.0
    %231 = vmatprep.subr.mxu0 0.0
    %232 = vmatpush1.msra.mxu0 0.0
    %233 = vmatprep.subr.mxu0 0.0
    %234 = vmatpush1.msra.mxu0 0.0
    %235 = vmatprep.subr.mxu0 0.0
    %236 = vmatpush1.msra.mxu0 0.0
    %237 = vmatprep.subr.mxu0 0.0
    %238 = vmatpush1.msra.mxu0 0.0
    %239 = vmatprep.subr.mxu0 0.0
    %240 = vmatpush1.msra.mxu0 0.0
    %241 = vmatprep.subr.mxu0 0.0
    %242 = vmatpush1.msra.mxu0 0.0
    %243 = vmatprep.subr.mxu0 0.0
    %244 = vmatpush1.msra.mxu0 0.0
    %245 = vmatprep.mubr.f32.mxu0 0.0
    %246 = vmatmul.mubr.f32.gmra.mrb[0].mxu0 %v69
    %v247 = vpop.f32.mrb[0].mxu0
    %v248 = vadd.f32 %v173, %v247
    %v249 = vpop.f32.mrb[0].mxu0
    %250 = vmatprep.mubr.f32.mxu0 0.0
    %251 = vmatmul.mubr.f32.gmra.mrb[0].mxu0 %v70
    %v252 = vpop.f32.mrb[0].mxu0
    %v253 = vadd.f32 %v178, %v252
    %v254 = vpop.f32.mrb[0].mxu0
    %255 = vdwg.mxu0
    %v256 = vld [vmem:[#allocation2 + $0x2] sm:$0xff]
    %v257 = vld [vmem:[#allocation2 + $0xa] sm:$0xff]
    %s258 = scalar_lea.vmem %s1, 256
    %v259 = vld [vmem:[%s258] sm:$0xff]
    %v260 = vld [vmem:[%s258 + $0x8] sm:$0xff]
    %v261 = vld [vmem:[%s258 + $0x10] sm:$0xff]
    %v262 = vld [vmem:[%s258 + $0x18] sm:$0xff]
    %v263 = vld [vmem:[%s258 + $0x20] sm:$0xff]
    %v264 = vld [vmem:[%s258 + $0x28] sm:$0xff]
    %v265 = vld [vmem:[%s258 + $0x30] sm:$0xff]
    %v266 = vld [vmem:[%s258 + $0x38] sm:$0xff]
    %v267 = vld [vmem:[%s258 + $0x40] sm:$0xff]
    %v268 = vld [vmem:[%s258 + $0x48] sm:$0xff]
    %v269 = vld [vmem:[%s258 + $0x50] sm:$0xff]
    %v270 = vld [vmem:[%s258 + $0x58] sm:$0xff]
    %v271 = vld [vmem:[%s258 + $0x60] sm:$0xff]
    %v272 = vld [vmem:[%s258 + $0x68] sm:$0xff]
    %v273 = vld [vmem:[%s258 + $0x70] sm:$0xff]
    %v274 = vld [vmem:[%s258 + $0x78] sm:$0xff]
    %275 = vmatprep.subr.mxu0 0.0
    %276 = vmatpush1.msra.mxu0 %v259
    %277 = vmatprep.subr.mxu0 0.0
    %278 = vmatpush1.msra.mxu0 %v260
    %279 = vmatprep.subr.mxu0 0.0
    %280 = vmatpush1.msra.mxu0 %v261
    %281 = vmatprep.subr.mxu0 0.0
    %282 = vmatpush1.msra.mxu0 %v262
    %283 = vmatprep.subr.mxu0 0.0
    %284 = vmatpush1.msra.mxu0 %v263
    %285 = vmatprep.subr.mxu0 0.0
    %286 = vmatpush1.msra.mxu0 %v264
    %287 = vmatprep.subr.mxu0 0.0
    %288 = vmatpush1.msra.mxu0 %v265
    %289 = vmatprep.subr.mxu0 0.0
    %290 = vmatpush1.msra.mxu0 %v266
    %291 = vmatprep.subr.mxu0 0.0
    %292 = vmatpush1.msra.mxu0 %v267
    %293 = vmatprep.subr.mxu0 0.0
    %294 = vmatpush1.msra.mxu0 %v268
    %295 = vmatprep.subr.mxu0 0.0
    %296 = vmatpush1.msra.mxu0 %v269
    %297 = vmatprep.subr.mxu0 0.0
    %298 = vmatpush1.msra.mxu0 %v270
    %299 = vmatprep.subr.mxu0 0.0
    %300 = vmatpush1.msra.mxu0 %v271
    %301 = vmatprep.subr.mxu0 0.0
    %302 = vmatpush1.msra.mxu0 %v272
    %303 = vmatprep.subr.mxu0 0.0
    %304 = vmatpush1.msra.mxu0 %v273
    %305 = vmatprep.subr.mxu0 0.0
    %306 = vmatpush1.msra.mxu0 %v274
    %307 = vmatprep.subr.mxu0 0.0
    %308 = vmatpush1.msra.mxu0 0.0
    %309 = vmatprep.subr.mxu0 0.0
    %310 = vmatpush1.msra.mxu0 0.0
    %311 = vmatprep.subr.mxu0 0.0
    %312 = vmatpush1.msra.mxu0 0.0
    %313 = vmatprep.subr.mxu0 0.0
    %314 = vmatpush1.msra.mxu0 0.0
    %315 = vmatprep.subr.mxu0 0.0
    %316 = vmatpush1.msra.mxu0 0.0
    %317 = vmatprep.subr.mxu0 0.0
    %318 = vmatpush1.msra.mxu0 0.0
    %319 = vmatprep.subr.mxu0 0.0
    %320 = vmatpush1.msra.mxu0 0.0
    %321 = vmatprep.subr.mxu0 0.0
    %322 = vmatpush1.msra.mxu0 0.0
    %323 = vmatprep.subr.mxu0 0.0
    %324 = vmatpush1.msra.mxu0 0.0
    %325 = vmatprep.subr.mxu0 0.0
    %326 = vmatpush1.msra.mxu0 0.0
    %327 = vmatprep.subr.mxu0 0.0
    %328 = vmatpush1.msra.mxu0 0.0
    %329 = vmatprep.subr.mxu0 0.0
    %330 = vmatpush1.msra.mxu0 0.0
    %331 = vmatprep.subr.mxu0 0.0
    %332 = vmatpush1.msra.mxu0 0.0
    %333 = vmatprep.subr.mxu0 0.0
    %334 = vmatpush1.msra.mxu0 0.0
    %335 = vmatprep.subr.mxu0 0.0
    %336 = vmatpush1.msra.mxu0 0.0
    %337 = vmatprep.subr.mxu0 0.0
    %338 = vmatpush1.msra.mxu0 0.0
    %339 = vmatprep.mubr.f32.mxu0 0.0
    %340 = vmatmul.mubr.f32.gmra.mrb[0].mxu0 %v256
    %v341 = vpop.f32.mrb[0].mxu0
    %v342 = vadd.f32 0.0, %v341
    %v343 = vpop.f32.mrb[0].mxu0
    %344 = vmatprep.mubr.f32.mxu0 0.0
    %345 = vmatmul.mubr.f32.gmra.mrb[0].mxu0 %v257
    %v346 = vpop.f32.mrb[0].mxu0
    %v347 = vadd.f32 0.0, %v346
    %v348 = vpop.f32.mrb[0].mxu0
    %349 = vdwg.mxu0
    %v350 = vadd.f32 %v248, %v342
    %v351 = vadd.f32 %v253, %v347
    %v352 = vld [vmem:[%s3] sm:$0x1]
    %v353 = vld [vmem:[%s4] sm:$0x1]
    %v354 = vadd.f32 %v350, %v351
    %v355 = vrot.slane %v354, 4
    %v356 = vadd.f32 %v354, %v355
    %v357 = vrot.slane %v356, 2
    %v358 = vadd.f32 %v356, %v357
    %v359 = vrot.slane %v358, 1
    %v360 = vadd.f32 %v358, %v359
    %361 = vst [vmem:[#allocation3] sm:$0x1] %v360
    %v362 = vmul.f32 %v350, %v350
    %v363 = vmul.f32 %v351, %v351
    %v364 = vadd.f32 %v362, %v363
    %v365 = vrot.slane %v364, 4
    %v366 = vadd.f32 %v364, %v365
    %v367 = vrot.slane %v366, 2
    %v368 = vadd.f32 %v366, %v367
    %v369 = vrot.slane %v368, 1
    %v370 = vadd.f32 %v368, %v369
    %371 = vst [vmem:[#allocation3 + $0x1] sm:$0x1] %v370
    %v372 = vld [vmem:[#allocation3] sm:$0x3]
    %373 = vmatprep.subr.mxu0 0.0
    %374 = vmatpush1.msra.mxu0 %v46
    %375 = vmatprep.subr.mxu0 0.0
    %376 = vmatpush1.msra.mxu0 %v47
    %377 = vmatprep.subr.mxu0 0.0
    %378 = vmatpush1.msra.mxu0 %v48
    %379 = vmatprep.subr.mxu0 0.0
    %380 = vmatpush1.msra.mxu0 %v49
    %381 = vmatprep.subr.mxu0 0.0
    %382 = vmatpush1.msra.mxu0 %v50
    %383 = vmatprep.subr.mxu0 0.0
    %384 = vmatpush1.msra.mxu0 %v51
    %385 = vmatprep.subr.mxu0 0.0
    %386 = vmatpush1.msra.mxu0 %v52
    %387 = vmatprep.subr.mxu0 0.0
    %388 = vmatpush1.msra.mxu0 %v53
    %389 = vmatprep.subr.mxu0 0.0
    %390 = vmatpush1.msra.mxu0 %v54
    %391 = vmatprep.subr.mxu0 0.0
    %392 = vmatpush1.msra.mxu0 %v55
    %393 = vmatprep.subr.mxu0 0.0
    %394 = vmatpush1.msra.mxu0 %v56
    %395 = vmatprep.subr.mxu0 0.0
    %396 = vmatpush1.msra.mxu0 %v57
    %397 = vmatprep.subr.mxu0 0.0
    %398 = vmatpush1.msra.mxu0 %v58
    %399 = vmatprep.subr.mxu0 0.0
    %400 = vmatpush1.msra.mxu0 %v59
    %401 = vmatprep.subr.mxu0 0.0
    %402 = vmatpush1.msra.mxu0 %v60
    %403 = vmatprep.subr.mxu0 0.0
    %404 = vmatpush1.msra.mxu0 %v61
    %405 = vmatprep.subr.mxu0 0.0
    %406 = vmatpush1.msra.mxu0 0.0
    %407 = vmatprep.subr.mxu0 0.0
    %408 = vmatpush1.msra.mxu0 0.0
    %409 = vmatprep.subr.mxu0 0.0
    %410 = vmatpush1.msra.mxu0 0.0
    %411 = vmatprep.subr.mxu0 0.0
    %412 = vmatpush1.msra.mxu0 0.0
    %413 = vmatprep.subr.mxu0 0.0
    %414 = vmatpush1.msra.mxu0 0.0
    %415 = vmatprep.subr.mxu0 0.0
    %416 = vmatpush1.msra.mxu0 0.0
    %417 = vmatprep.subr.mxu0 0.0
    %418 = vmatpush1.msra.mxu0 0.0
    %419 = vmatprep.subr.mxu0 0.0
    %420 = vmatpush1.msra.mxu0 0.0
    %421 = vmatprep.subr.mxu0 0.0
    %422 = vmatpush1.msra.mxu0 0.0
    %423 = vmatprep.subr.mxu0 0.0
    %424 = vmatpush1.msra.mxu0 0.0
    %425 = vmatprep.subr.mxu0 0.0
    %426 = vmatpush1.msra.mxu0 0.0
    %427 = vmatprep.subr.mxu0 0.0
    %428 = vmatpush1.msra.mxu0 0.0
    %429 = vmatprep.subr.mxu0 0.0
    %430 = vmatpush1.msra.mxu0 0.0
    %431 = vmatprep.subr.mxu0 0.0
    %432 = vmatpush1.msra.mxu0 0.0
    %433 = vmatprep.subr.mxu0 0.0
    %434 = vmatpush1.msra.mxu0 0.0
    %435 = vmatprep.subr.mxu0 0.0
    %436 = vmatpush1.msra.mxu0 0.0
    %437 = vmatprep.mubr.f32.mxu0 0.0
    %438 = vmatmul.mubr.f32.gmra.mrb[0].mxu0 %v372
    %v439 = vpop.f32.mrb[0].mxu0
    %v440 = vadd.f32 0.0, %v439
    %v441 = vpop.f32.mrb[0].mxu0
    %442 = vdwg.mxu0
    %v443 = vmul.f32 %v440, 0.001953125
    %v444 = vmul.f32 %v443, %v443
    %v446 = vrot.slane %v444, 7
    %v448 = vsub.f32 %v443, %v446
    %v449 = vadd.f32 %v448, 1e-05
    %v450 = vrsqrt.pop %v449
    %v453 = vunpack.c.l.s4 1966171168
    %v454 = vunpack.c.0.s8 %v453
    %v455 = vlaneseq
    %v456 = vshrl.u32 %v455, 7
    %v457 = vsub.s32 %v454, %v456
    %v458 = vrot.slane %v450, %v457
    %v459 = vcombine.high %v458, %v458
    %v461 = vunpack.c.l.s4 1966171168
    %v462 = vunpack.c.0.s8 %v461
    %v463 = vlaneseq
    %v464 = vshrl.u32 %v463, 7
    %v465 = vsub.s32 %v462, %v464
    %v466 = vrot.slane %v459, %v465
    %v468 = vmul.f32 %v352, %v466
    %v469 = vmul.f32 %v443, %v468
    %v470 = vsub.f32 %v353, %v469
    %vm471 = vcmask 24576
    %472 = vst.msk [vmem:[#allocation4] sm:$0x1] %vm471, %v468
    %473 = vst.msk [vmem:[#allocation4 + $0x1] sm:$0x1] %vm471, %v470
    %v474 = vld [vmem:[#allocation4] sm:$0x3]
    %vm475 = vcmask 31744
    %v477 = vsel %vm475, %v474, 0
    %vm479 = vcmask 1043456
    %v481 = vsel %vm479, %v62, 0
    %483 = vmatprep.subr.mxu0 0.0
    %484 = vmatpush1.msra.mxu0 %v481
    %485 = vmatprep.subr.mxu0 0.0
    %486 = vmatpush1.msra.mxu0 0.0
    %487 = vmatprep.subr.mxu0 0.0
    %488 = vmatpush1.msra.mxu0 0.0
    %489 = vmatprep.subr.mxu0 0.0
    %490 = vmatpush1.msra.mxu0 0.0
    %491 = vmatprep.subr.mxu0 0.0
    %492 = vmatpush1.msra.mxu0 0.0
    %493 = vmatprep.subr.mxu0 0.0
    %494 = vmatpush1.msra.mxu0 0.0
    %495 = vmatprep.subr.mxu0 0.0
    %496 = vmatpush1.msra.mxu0 0.0
    %497 = vmatprep.subr.mxu0 0.0
    %498 = vmatpush1.msra.mxu0 0.0
    %499 = vmatprep.subr.mxu0 0.0
    %500 = vmatpush1.msra.mxu0 0.0
    %501 = vmatprep.subr.mxu0 0.0
    %502 = vmatpush1.msra.mxu0 0.0
    %503 = vmatprep.subr.mxu0 0.0
    %504 = vmatpush1.msra.mxu0 0.0
    %505 = vmatprep.subr.mxu0 0.0
    %506 = vmatpush1.msra.mxu0 0.0
    %507 = vmatprep.subr.mxu0 0.0
    %508 = vmatpush1.msra.mxu0 0.0
    %509 = vmatprep.subr.mxu0 0.0
    %510 = vmatpush1.msra.mxu0 0.0
    %511 = vmatprep.subr.mxu0 0.0
    %512 = vmatpush1.msra.mxu0 0.0
    %513 = vmatprep.subr.mxu0 0.0
    %514 = vmatpush1.msra.mxu0 0.0
    %515 = vmatprep.subr.mxu0 0.0
    %516 = vmatpush1.msra.mxu0 0.0
    %517 = vmatprep.subr.mxu0 0.0
    %518 = vmatpush1.msra.mxu0 0.0
    %519 = vmatprep.subr.mxu0 0.0
    %520 = vmatpush1.msra.mxu0 0.0
    %521 = vmatprep.subr.mxu0 0.0
    %522 = vmatpush1.msra.mxu0 0.0
    %523 = vmatprep.subr.mxu0 0.0
    %524 = vmatpush1.msra.mxu0 0.0
    %525 = vmatprep.subr.mxu0 0.0
    %526 = vmatpush1.msra.mxu0 0.0
    %527 = vmatprep.subr.mxu0 0.0
    %528 = vmatpush1.msra.mxu0 0.0
    %529 = vmatprep.subr.mxu0 0.0
    %530 = vmatpush1.msra.mxu0 0.0
    %531 = vmatprep.subr.mxu0 0.0
    %532 = vmatpush1.msra.mxu0 0.0
    %533 = vmatprep.subr.mxu0 0.0
    %534 = vmatpush1.msra.mxu0 0.0
    %535 = vmatprep.subr.mxu0 0.0
    %536 = vmatpush1.msra.mxu0 0.0
    %537 = vmatprep.subr.mxu0 0.0
    %538 = vmatpush1.msra.mxu0 0.0
    %539 = vmatprep.subr.mxu0 0.0
    %540 = vmatpush1.msra.mxu0 0.0
    %541 = vmatprep.subr.mxu0 0.0
    %542 = vmatpush1.msra.mxu0 0.0
    %543 = vmatprep.subr.mxu0 0.0
    %544 = vmatpush1.msra.mxu0 0.0
    %545 = vmatprep.subr.mxu0 0.0
    %546 = vmatpush1.msra.mxu0 0.0
    %547 = vmatprep.mubr.f32.mxu0 0.0
    %548 = vmatmul.mubr.f32.gmra.mrb[0].mxu0 %v477
    %v549 = vpop.f32.mrb[0].mxu0
    %v550 = vadd.f32 0.0, %v549
    %v551 = vpop.f32.mrb[0].mxu0
    %552 = vdwg.mxu0
    %v553 = vlaneseq
    %v554 = vshrl.u32 %v553, 7
    %v555 = vsub.s32 0, %v554
    %v556 = vrot.slane %v550, %v555
    %v557 = vmul.f32 %v350, %v556
    %v558 = vmul.f32 %v351, %v556
    %v559 = vlaneseq
    %v560 = vshrl.u32 %v559, 7
    %v561 = vsub.s32 1, %v560
    %v562 = vrot.slane %v550, %v561
    %v563 = vadd.f32 %v557, %v562
    %v564 = vadd.f32 %v558, %v562
    %v565 = vmax.f32 %v563, 0.0
    %v566 = vmax.f32 %v564, 0.0
    %567 = vst [vmem:[#allocation2 + $0x1] sm:$0xff] %v565
    %568 = vst [vmem:[#allocation2 + $0x9] sm:$0xff] %v566
    %v569 = vld [vmem:[#allocation2] sm:$0xff]
    %v570 = vld [vmem:[#allocation2 + $0x8] sm:$0xff]
    %v571 = vld [vmem:[#allocation5] sm:$0xff]
    %v572 = vld [vmem:[#allocation5 + $0x8] sm:$0xff]
    %v573 = vld [vmem:[#allocation5 + $0x10] sm:$0xff]
    %v574 = vld [vmem:[#allocation5 + $0x18] sm:$0xff]
    %v575 = vld [vmem:[#allocation5 + $0x20] sm:$0xff]
    %v576 = vld [vmem:[#allocation5 + $0x28] sm:$0xff]
    %v577 = vld [vmem:[#allocation5 + $0x30] sm:$0xff]
    %v578 = vld [vmem:[#allocation5 + $0x38] sm:$0xff]
    %v579 = vld [vmem:[#allocation5 + $0x40] sm:$0xff]
    %v580 = vld [vmem:[#allocation5 + $0x48] sm:$0xff]
    %v581 = vld [vmem:[#allocation5 + $0x50] sm:$0xff]
    %v582 = vld [vmem:[#allocation5 + $0x58] sm:$0xff]
    %v583 = vld [vmem:[#allocation5 + $0x60] sm:$0xff]
    %v584 = vld [vmem:[#allocation5 + $0x68] sm:$0xff]
    %v585 = vld [vmem:[#allocation5 + $0x70] sm:$0xff]
    %v586 = vld [vmem:[#allocation5 + $0x78] sm:$0xff]
    %v587 = vld [vmem:[#allocation2 + $0x1] sm:$0xff]
    %v588 = vld [vmem:[#allocation2 + $0x9] sm:$0xff]
    %s589 = scalar_lea.vmem [#allocation5], 128
    %v590 = vld [vmem:[%s589] sm:$0xff]
    %v591 = vld [vmem:[%s589 + $0x8] sm:$0xff]
    %v592 = vld [vmem:[%s589 + $0x10] sm:$0xff]
    %v593 = vld [vmem:[%s589 + $0x18] sm:$0xff]
    %v594 = vld [vmem:[%s589 + $0x20] sm:$0xff]
    %v595 = vld [vmem:[%s589 + $0x28] sm:$0xff]
    %v596 = vld [vmem:[%s589 + $0x30] sm:$0xff]
    %v597 = vld [vmem:[%s589 + $0x38] sm:$0xff]
    %v598 = vld [vmem:[%s589 + $0x40] sm:$0xff]
    %v599 = vld [vmem:[%s589 + $0x48] sm:$0xff]
    %v600 = vld [vmem:[%s589 + $0x50] sm:$0xff]
    %v601 = vld [vmem:[%s589 + $0x58] sm:$0xff]
    %v602 = vld [vmem:[%s589 + $0x60] sm:$0xff]
    %v603 = vld [vmem:[%s589 + $0x68] sm:$0xff]
    %v604 = vld [vmem:[%s589 + $0x70] sm:$0xff]
    %v605 = vld [vmem:[%s589 + $0x78] sm:$0xff]
    %606 = vmatprep.subr.mxu0 0.0
    %607 = vmatpush1.msra.mxu0 %v590
    %608 = vmatprep.subr.mxu0 0.0
    %609 = vmatpush1.msra.mxu0 %v591
    %610 = vmatprep.subr.mxu0 0.0
    %611 = vmatpush1.msra.mxu0 %v592
    %612 = vmatprep.subr.mxu0 0.0
    %613 = vmatpush1.msra.mxu0 %v593
    %614 = vmatprep.subr.mxu0 0.0
    %615 = vmatpush1.msra.mxu0 %v594
    %616 = vmatprep.subr.mxu0 0.0
    %617 = vmatpush1.msra.mxu0 %v595
    %618 = vmatprep.subr.mxu0 0.0
    %619 = vmatpush1.msra.mxu0 %v596
    %620 = vmatprep.subr.mxu0 0.0
    %621 = vmatpush1.msra.mxu0 %v597
    %622 = vmatprep.subr.mxu0 0.0
    %623 = vmatpush1.msra.mxu0 %v598
    %624 = vmatprep.subr.mxu0 0.0
    %625 = vmatpush1.msra.mxu0 %v599
    %626 = vmatprep.subr.mxu0 0.0
    %627 = vmatpush1.msra.mxu0 %v600
    %628 = vmatprep.subr.mxu0 0.0
    %629 = vmatpush1.msra.mxu0 %v601
    %630 = vmatprep.subr.mxu0 0.0
    %631 = vmatpush1.msra.mxu0 %v602
    %632 = vmatprep.subr.mxu0 0.0
    %633 = vmatpush1.msra.mxu0 %v603
    %634 = vmatprep.subr.mxu0 0.0
    %635 = vmatpush1.msra.mxu0 %v604
    %636 = vmatprep.subr.mxu0 0.0
    %637 = vmatpush1.msra.mxu0 %v605
    %638 = vmatprep.subr.mxu0 0.0
    %639 = vmatpush1.msra.mxu0 0.0
    %640 = vmatprep.subr.mxu0 0.0
    %641 = vmatpush1.msra.mxu0 0.0
    %642 = vmatprep.subr.mxu0 0.0
    %643 = vmatpush1.msra.mxu0 0.0
    %644 = vmatprep.subr.mxu0 0.0
    %645 = vmatpush1.msra.mxu0 0.0
    %646 = vmatprep.subr.mxu0 0.0
    %647 = vmatpush1.msra.mxu0 0.0
    %648 = vmatprep.subr.mxu0 0.0
    %649 = vmatpush1.msra.mxu0 0.0
    %650 = vmatprep.subr.mxu0 0.0
    %651 = vmatpush1.msra.mxu0 0.0
    %652 = vmatprep.subr.mxu0 0.0
    %653 = vmatpush1.msra.mxu0 0.0
    %654 = vmatprep.subr.mxu0 0.0
    %655 = vmatpush1.msra.mxu0 0.0
    %656 = vmatprep.subr.mxu0 0.0
    %657 = vmatpush1.msra.mxu0 0.0
    %658 = vmatprep.subr.mxu0 0.0
    %659 = vmatpush1.msra.mxu0 0.0
    %660 = vmatprep.subr.mxu0 0.0
    %661 = vmatpush1.msra.mxu0 0.0
    %662 = vmatprep.subr.mxu0 0.0
    %663 = vmatpush1.msra.mxu0 0.0
    %664 = vmatprep.subr.mxu0 0.0
    %665 = vmatpush1.msra.mxu0 0.0
    %666 = vmatprep.subr.mxu0 0.0
    %667 = vmatpush1.msra.mxu0 0.0
    %668 = vmatprep.subr.mxu0 0.0
    %669 = vmatpush1.msra.mxu0 0.0
    %670 = vmatprep.mubr.f32.mxu0 0.0
    %671 = vmatmul.mubr.f32.gmra.mrb[0].mxu0 %v587
    %v672 = vpop.f32.mrb[0].mxu0
    %v673 = vadd.f32 0.0, %v672
    %v674 = vpop.f32.mrb[0].mxu0
    %675 = vmatprep.mubr.f32.mxu0 0.0
    %676 = vmatmul.mubr.f32.gmra.mrb[0].mxu0 %v588
    %v677 = vpop.f32.mrb[0].mxu0
    %v678 = vadd.f32 0.0, %v677
    %v679 = vpop.f32.mrb[0].mxu0
    %680 = vdwg.mxu0
    %681 = vmatprep.subr.mxu0 0.0
    %682 = vmatpush1.msra.mxu0 %v571
    %683 = vmatprep.subr.mxu0 0.0
    %684 = vmatpush1.msra.mxu0 %v572
    %685 = vmatprep.subr.mxu0 0.0
    %686 = vmatpush1.msra.mxu0 %v573
    %687 = vmatprep.subr.mxu0 0.0
    %688 = vmatpush1.msra.mxu0 %v574
    %689 = vmatprep.subr.mxu0 0.0
    %690 = vmatpush1.msra.mxu0 %v575
    %691 = vmatprep.subr.mxu0 0.0
    %692 = vmatpush1.msra.mxu0 %v576
    %693 = vmatprep.subr.mxu0 0.0
    %694 = vmatpush1.msra.mxu0 %v577
    %695 = vmatprep.subr.mxu0 0.0
    %696 = vmatpush1.msra.mxu0 %v578
    %697 = vmatprep.subr.mxu0 0.0
    %698 = vmatpush1.msra.mxu0 %v579
    %699 = vmatprep.subr.mxu0 0.0
    %700 = vmatpush1.msra.mxu0 %v580
    %701 = vmatprep.subr.mxu0 0.0
    %702 = vmatpush1.msra.mxu0 %v581
    %703 = vmatprep.subr.mxu0 0.0
    %704 = vmatpush1.msra.mxu0 %v582
    %705 = vmatprep.subr.mxu0 0.0
    %706 = vmatpush1.msra.mxu0 %v583
    %707 = vmatprep.subr.mxu0 0.0
    %708 = vmatpush1.msra.mxu0 %v584
    %709 = vmatprep.subr.mxu0 0.0
    %710 = vmatpush1.msra.mxu0 %v585
    %711 = vmatprep.subr.mxu0 0.0
    %712 = vmatpush1.msra.mxu0 %v586
    %713 = vmatprep.subr.mxu0 0.0
    %714 = vmatpush1.msra.mxu0 0.0
    %715 = vmatprep.subr.mxu0 0.0
    %716 = vmatpush1.msra.mxu0 0.0
    %717 = vmatprep.subr.mxu0 0.0
    %718 = vmatpush1.msra.mxu0 0.0
    %719 = vmatprep.subr.mxu0 0.0
    %720 = vmatpush1.msra.mxu0 0.0
    %721 = vmatprep.subr.mxu0 0.0
    %722 = vmatpush1.msra.mxu0 0.0
    %723 = vmatprep.subr.mxu0 0.0
    %724 = vmatpush1.msra.mxu0 0.0
    %725 = vmatprep.subr.mxu0 0.0
    %726 = vmatpush1.msra.mxu0 0.0
    %727 = vmatprep.subr.mxu0 0.0
    %728 = vmatpush1.msra.mxu0 0.0
    %729 = vmatprep.subr.mxu0 0.0
    %730 = vmatpush1.msra.mxu0 0.0
    %731 = vmatprep.subr.mxu0 0.0
    %732 = vmatpush1.msra.mxu0 0.0
    %733 = vmatprep.subr.mxu0 0.0
    %734 = vmatpush1.msra.mxu0 0.0
    %735 = vmatprep.subr.mxu0 0.0
    %736 = vmatpush1.msra.mxu0 0.0
    %737 = vmatprep.subr.mxu0 0.0
    %738 = vmatpush1.msra.mxu0 0.0
    %739 = vmatprep.subr.mxu0 0.0
    %740 = vmatpush1.msra.mxu0 0.0
    %741 = vmatprep.subr.mxu0 0.0
    %742 = vmatpush1.msra.mxu0 0.0
    %743 = vmatprep.subr.mxu0 0.0
    %744 = vmatpush1.msra.mxu0 0.0
    %745 = vmatprep.mubr.f32.mxu0 0.0
    %746 = vmatmul.mubr.f32.gmra.mrb[0].mxu0 %v569
    %v747 = vpop.f32.mrb[0].mxu0
    %v748 = vadd.f32 %v673, %v747
    %v749 = vpop.f32.mrb[0].mxu0
    %750 = vmatprep.mubr.f32.mxu0 0.0
    %751 = vmatmul.mubr.f32.gmra.mrb[0].mxu0 %v570
    %v752 = vpop.f32.mrb[0].mxu0
    %v753 = vadd.f32 %v678, %v752
    %v754 = vpop.f32.mrb[0].mxu0
    %755 = vdwg.mxu0
    %v756 = vld [vmem:[#allocation2 + $0x2] sm:$0xff]
    %v757 = vld [vmem:[#allocation2 + $0xa] sm:$0xff]
    %s758 = scalar_lea.vmem [#allocation5], 256
    %v759 = vld [vmem:[%s758] sm:$0xff]
    %v760 = vld [vmem:[%s758 + $0x8] sm:$0xff]
    %v761 = vld [vmem:[%s758 + $0x10] sm:$0xff]
    %v762 = vld [vmem:[%s758 + $0x18] sm:$0xff]
    %v763 = vld [vmem:[%s758 + $0x20] sm:$0xff]
    %v764 = vld [vmem:[%s758 + $0x28] sm:$0xff]
    %v765 = vld [vmem:[%s758 + $0x30] sm:$0xff]
    %v766 = vld [vmem:[%s758 + $0x38] sm:$0xff]
    %v767 = vld [vmem:[%s758 + $0x40] sm:$0xff]
    %v768 = vld [vmem:[%s758 + $0x48] sm:$0xff]
    %v769 = vld [vmem:[%s758 + $0x50] sm:$0xff]
    %v770 = vld [vmem:[%s758 + $0x58] sm:$0xff]
    %v771 = vld [vmem:[%s758 + $0x60] sm:$0xff]
    %v772 = vld [vmem:[%s758 + $0x68] sm:$0xff]
    %v773 = vld [vmem:[%s758 + $0x70] sm:$0xff]
    %v774 = vld [vmem:[%s758 + $0x78] sm:$0xff]
    %775 = vmatprep.subr.mxu0 0.0
    %776 = vmatpush1.msra.mxu0 %v759
    %777 = vmatprep.subr.mxu0 0.0
    %778 = vmatpush1.msra.mxu0 %v760
    %779 = vmatprep.subr.mxu0 0.0
    %780 = vmatpush1.msra.mxu0 %v761
    %781 = vmatprep.subr.mxu0 0.0
    %782 = vmatpush1.msra.mxu0 %v762
    %783 = vmatprep.subr.mxu0 0.0
    %784 = vmatpush1.msra.mxu0 %v763
    %785 = vmatprep.subr.mxu0 0.0
    %786 = vmatpush1.msra.mxu0 %v764
    %787 = vmatprep.subr.mxu0 0.0
    %788 = vmatpush1.msra.mxu0 %v765
    %789 = vmatprep.subr.mxu0 0.0
    %790 = vmatpush1.msra.mxu0 %v766
    %791 = vmatprep.subr.mxu0 0.0
    %792 = vmatpush1.msra.mxu0 %v767
    %793 = vmatprep.subr.mxu0 0.0
    %794 = vmatpush1.msra.mxu0 %v768
    %795 = vmatprep.subr.mxu0 0.0
    %796 = vmatpush1.msra.mxu0 %v769
    %797 = vmatprep.subr.mxu0 0.0
    %798 = vmatpush1.msra.mxu0 %v770
    %799 = vmatprep.subr.mxu0 0.0
    %800 = vmatpush1.msra.mxu0 %v771
    %801 = vmatprep.subr.mxu0 0.0
    %802 = vmatpush1.msra.mxu0 %v772
    %803 = vmatprep.subr.mxu0 0.0
    %804 = vmatpush1.msra.mxu0 %v773
    %805 = vmatprep.subr.mxu0 0.0
    %806 = vmatpush1.msra.mxu0 %v774
    %807 = vmatprep.subr.mxu0 0.0
    %808 = vmatpush1.msra.mxu0 0.0
    %809 = vmatprep.subr.mxu0 0.0
    %810 = vmatpush1.msra.mxu0 0.0
    %811 = vmatprep.subr.mxu0 0.0
    %812 = vmatpush1.msra.mxu0 0.0
    %813 = vmatprep.subr.mxu0 0.0
    %814 = vmatpush1.msra.mxu0 0.0
    %815 = vmatprep.subr.mxu0 0.0
    %816 = vmatpush1.msra.mxu0 0.0
    %817 = vmatprep.subr.mxu0 0.0
    %818 = vmatpush1.msra.mxu0 0.0
    %819 = vmatprep.subr.mxu0 0.0
    %820 = vmatpush1.msra.mxu0 0.0
    %821 = vmatprep.subr.mxu0 0.0
    %822 = vmatpush1.msra.mxu0 0.0
    %823 = vmatprep.subr.mxu0 0.0
    %824 = vmatpush1.msra.mxu0 0.0
    %825 = vmatprep.subr.mxu0 0.0
    %826 = vmatpush1.msra.mxu0 0.0
    %827 = vmatprep.subr.mxu0 0.0
    %828 = vmatpush1.msra.mxu0 0.0
    %829 = vmatprep.subr.mxu0 0.0
    %830 = vmatpush1.msra.mxu0 0.0
    %831 = vmatprep.subr.mxu0 0.0
    %832 = vmatpush1.msra.mxu0 0.0
    %833 = vmatprep.subr.mxu0 0.0
    %834 = vmatpush1.msra.mxu0 0.0
    %835 = vmatprep.subr.mxu0 0.0
    %836 = vmatpush1.msra.mxu0 0.0
    %837 = vmatprep.subr.mxu0 0.0
    %838 = vmatpush1.msra.mxu0 0.0
    %839 = vmatprep.mubr.f32.mxu0 0.0
    %840 = vmatmul.mubr.f32.gmra.mrb[0].mxu0 %v756
    %v841 = vpop.f32.mrb[0].mxu0
    %v842 = vadd.f32 0.0, %v841
    %v843 = vpop.f32.mrb[0].mxu0
    %844 = vmatprep.mubr.f32.mxu0 0.0
    %845 = vmatmul.mubr.f32.gmra.mrb[0].mxu0 %v757
    %v846 = vpop.f32.mrb[0].mxu0
    %v847 = vadd.f32 0.0, %v846
    %v848 = vpop.f32.mrb[0].mxu0
    %849 = vdwg.mxu0
    %v850 = vadd.f32 %v748, %v842
    %v851 = vadd.f32 %v753, %v847
    %v852 = vld [vmem:[%s5] sm:$0x1]
    %v853 = vld [vmem:[%s6] sm:$0x1]
    %v854 = vadd.f32 %v850, %v851
    %v855 = vrot.slane %v854, 4
    %v856 = vadd.f32 %v854, %v855
    %v857 = vrot.slane %v856, 2
    %v858 = vadd.f32 %v856, %v857
    %v859 = vrot.slane %v858, 1
    %v860 = vadd.f32 %v858, %v859
    %861 = vst [vmem:[#allocation3] sm:$0x1] %v860
    %v862 = vmul.f32 %v850, %v850
    %v863 = vmul.f32 %v851, %v851
    %v864 = vadd.f32 %v862, %v863
    %v865 = vrot.slane %v864, 4
    %v866 = vadd.f32 %v864, %v865
    %v867 = vrot.slane %v866, 2
    %v868 = vadd.f32 %v866, %v867
    %v869 = vrot.slane %v868, 1
    %v870 = vadd.f32 %v868, %v869
    %871 = vst [vmem:[#allocation3 + $0x1] sm:$0x1] %v870
    %v872 = vld [vmem:[#allocation3] sm:$0x3]
    %873 = vmatprep.subr.mxu0 0.0
    %874 = vmatpush1.msra.mxu0 %v46
    %875 = vmatprep.subr.mxu0 0.0
    %876 = vmatpush1.msra.mxu0 %v47
    %877 = vmatprep.subr.mxu0 0.0
    %878 = vmatpush1.msra.mxu0 %v48
    %879 = vmatprep.subr.mxu0 0.0
    %880 = vmatpush1.msra.mxu0 %v49
    %881 = vmatprep.subr.mxu0 0.0
    %882 = vmatpush1.msra.mxu0 %v50
    %883 = vmatprep.subr.mxu0 0.0
    %884 = vmatpush1.msra.mxu0 %v51
    %885 = vmatprep.subr.mxu0 0.0
    %886 = vmatpush1.msra.mxu0 %v52
    %887 = vmatprep.subr.mxu0 0.0
    %888 = vmatpush1.msra.mxu0 %v53
    %889 = vmatprep.subr.mxu0 0.0
    %890 = vmatpush1.msra.mxu0 %v54
    %891 = vmatprep.subr.mxu0 0.0
    %892 = vmatpush1.msra.mxu0 %v55
    %893 = vmatprep.subr.mxu0 0.0
    %894 = vmatpush1.msra.mxu0 %v56
    %895 = vmatprep.subr.mxu0 0.0
    %896 = vmatpush1.msra.mxu0 %v57
    %897 = vmatprep.subr.mxu0 0.0
    %898 = vmatpush1.msra.mxu0 %v58
    %899 = vmatprep.subr.mxu0 0.0
    %900 = vmatpush1.msra.mxu0 %v59
    %901 = vmatprep.subr.mxu0 0.0
    %902 = vmatpush1.msra.mxu0 %v60
    %903 = vmatprep.subr.mxu0 0.0
    %904 = vmatpush1.msra.mxu0 %v61
    %905 = vmatprep.subr.mxu0 0.0
    %906 = vmatpush1.msra.mxu0 0.0
    %907 = vmatprep.subr.mxu0 0.0
    %908 = vmatpush1.msra.mxu0 0.0
    %909 = vmatprep.subr.mxu0 0.0
    %910 = vmatpush1.msra.mxu0 0.0
    %911 = vmatprep.subr.mxu0 0.0
    %912 = vmatpush1.msra.mxu0 0.0
    %913 = vmatprep.subr.mxu0 0.0
    %914 = vmatpush1.msra.mxu0 0.0
    %915 = vmatprep.subr.mxu0 0.0
    %916 = vmatpush1.msra.mxu0 0.0
    %917 = vmatprep.subr.mxu0 0.0
    %918 = vmatpush1.msra.mxu0 0.0
    %919 = vmatprep.subr.mxu0 0.0
    %920 = vmatpush1.msra.mxu0 0.0
    %921 = vmatprep.subr.mxu0 0.0
    %922 = vmatpush1.msra.mxu0 0.0
    %923 = vmatprep.subr.mxu0 0.0
    %924 = vmatpush1.msra.mxu0 0.0
    %925 = vmatprep.subr.mxu0 0.0
    %926 = vmatpush1.msra.mxu0 0.0
    %927 = vmatprep.subr.mxu0 0.0
    %928 = vmatpush1.msra.mxu0 0.0
    %929 = vmatprep.subr.mxu0 0.0
    %930 = vmatpush1.msra.mxu0 0.0
    %931 = vmatprep.subr.mxu0 0.0
    %932 = vmatpush1.msra.mxu0 0.0
    %933 = vmatprep.subr.mxu0 0.0
    %934 = vmatpush1.msra.mxu0 0.0
    %935 = vmatprep.subr.mxu0 0.0
    %936 = vmatpush1.msra.mxu0 0.0
    %937 = vmatprep.mubr.f32.mxu0 0.0
    %938 = vmatmul.mubr.f32.gmra.mrb[0].mxu0 %v872
    %v939 = vpop.f32.mrb[0].mxu0
    %v940 = vadd.f32 0.0, %v939
    %v941 = vpop.f32.mrb[0].mxu0
    %942 = vdwg.mxu0
    %v943 = vmul.f32 %v940, 0.001953125
    %v944 = vmul.f32 %v943, %v943
    %v946 = vrot.slane %v944, 7
    %v948 = vsub.f32 %v943, %v946
    %v949 = vadd.f32 %v948, 1e-05
    %v950 = vrsqrt.pop %v949
    %v953 = vunpack.c.l.s4 1966171168
    %v954 = vunpack.c.0.s8 %v953
    %v955 = vlaneseq
    %v956 = vshrl.u32 %v955, 7
    %v957 = vsub.s32 %v954, %v956
    %v958 = vrot.slane %v950, %v957
    %v959 = vcombine.high %v958, %v958
    %v961 = vunpack.c.l.s4 1966171168
    %v962 = vunpack.c.0.s8 %v961
    %v963 = vlaneseq
    %v964 = vshrl.u32 %v963, 7
    %v965 = vsub.s32 %v962, %v964
    %v966 = vrot.slane %v959, %v965
    %v968 = vmul.f32 %v852, %v966
    %v969 = vmul.f32 %v943, %v968
    %v970 = vsub.f32 %v853, %v969
    %971 = vst.msk [vmem:[#allocation4] sm:$0x1] %vm471, %v968
    %972 = vst.msk [vmem:[#allocation4 + $0x1] sm:$0x1] %vm471, %v970
    %v973 = vld [vmem:[#allocation4] sm:$0x3]
    %v975 = vsel %vm475, %v973, 0
    %977 = vmatprep.subr.mxu0 0.0
    %978 = vmatpush1.msra.mxu0 %v481
    %979 = vmatprep.subr.mxu0 0.0
    %980 = vmatpush1.msra.mxu0 0.0
    %981 = vmatprep.subr.mxu0 0.0
    %982 = vmatpush1.msra.mxu0 0.0
    %983 = vmatprep.subr.mxu0 0.0
    %984 = vmatpush1.msra.mxu0 0.0
    %985 = vmatprep.subr.mxu0 0.0
    %986 = vmatpush1.msra.mxu0 0.0
    %987 = vmatprep.subr.mxu0 0.0
    %988 = vmatpush1.msra.mxu0 0.0
    %989 = vmatprep.subr.mxu0 0.0
    %990 = vmatpush1.msra.mxu0 0.0
    %991 = vmatprep.subr.mxu0 0.0
    %992 = vmatpush1.msra.mxu0 0.0
    %993 = vmatprep.subr.mxu0 0.0
    %994 = vmatpush1.msra.mxu0 0.0
    %995 = vmatprep.subr.mxu0 0.0
    %996 = vmatpush1.msra.mxu0 0.0
    %997 = vmatprep.subr.mxu0 0.0
    %998 = vmatpush1.msra.mxu0 0.0
    %999 = vmatprep.subr.mxu0 0.0
    %1000 = vmatpush1.msra.mxu0 0.0
    %1001 = vmatprep.subr.mxu0 0.0
    %1002 = vmatpush1.msra.mxu0 0.0
    %1003 = vmatprep.subr.mxu0 0.0
    %1004 = vmatpush1.msra.mxu0 0.0
    %1005 = vmatprep.subr.mxu0 0.0
    %1006 = vmatpush1.msra.mxu0 0.0
    %1007 = vmatprep.subr.mxu0 0.0
    %1008 = vmatpush1.msra.mxu0 0.0
    %1009 = vmatprep.subr.mxu0 0.0
    %1010 = vmatpush1.msra.mxu0 0.0
    %1011 = vmatprep.subr.mxu0 0.0
    %1012 = vmatpush1.msra.mxu0 0.0
    %1013 = vmatprep.subr.mxu0 0.0
    %1014 = vmatpush1.msra.mxu0 0.0
    %1015 = vmatprep.subr.mxu0 0.0
    %1016 = vmatpush1.msra.mxu0 0.0
    %1017 = vmatprep.subr.mxu0 0.0
    %1018 = vmatpush1.msra.mxu0 0.0
    %1019 = vmatprep.subr.mxu0 0.0
    %1020 = vmatpush1.msra.mxu0 0.0
    %1021 = vmatprep.subr.mxu0 0.0
    %1022 = vmatpush1.msra.mxu0 0.0
    %1023 = vmatprep.subr.mxu0 0.0
    %1024 = vmatpush1.msra.mxu0 0.0
    %1025 = vmatprep.subr.mxu0 0.0
    %1026 = vmatpush1.msra.mxu0 0.0
    %1027 = vmatprep.subr.mxu0 0.0
    %1028 = vmatpush1.msra.mxu0 0.0
    %1029 = vmatprep.subr.mxu0 0.0
    %1030 = vmatpush1.msra.mxu0 0.0
    %1031 = vmatprep.subr.mxu0 0.0
    %1032 = vmatpush1.msra.mxu0 0.0
    %1033 = vmatprep.subr.mxu0 0.0
    %1034 = vmatpush1.msra.mxu0 0.0
    %1035 = vmatprep.subr.mxu0 0.0
    %1036 = vmatpush1.msra.mxu0 0.0
    %1037 = vmatprep.subr.mxu0 0.0
    %1038 = vmatpush1.msra.mxu0 0.0
    %1039 = vmatprep.subr.mxu0 0.0
    %1040 = vmatpush1.msra.mxu0 0.0
    %1041 = vmatprep.mubr.f32.mxu0 0.0
    %1042 = vmatmul.mubr.f32.gmra.mrb[0].mxu0 %v975
    %v1043 = vpop.f32.mrb[0].mxu0
    %v1044 = vadd.f32 0.0, %v1043
    %v1045 = vpop.f32.mrb[0].mxu0
    %1046 = vdwg.mxu0
    %v1047 = vlaneseq
    %v1048 = vshrl.u32 %v1047, 7
    %v1049 = vsub.s32 0, %v1048
    %v1050 = vrot.slane %v1044, %v1049
    %v1051 = vmul.f32 %v850, %v1050
    %v1052 = vmul.f32 %v851, %v1050
    %v1053 = vlaneseq
    %v1054 = vshrl.u32 %v1053, 7
    %v1055 = vsub.s32 1, %v1054
    %v1056 = vrot.slane %v1044, %v1055
    %v1057 = vadd.f32 %v1051, %v1056
    %v1058 = vadd.f32 %v1052, %v1056
    %v1059 = vld [vmem:[%s0] sm:$0xff]
    %v1060 = vld [vmem:[%s0 + $0x8] sm:$0xff]
    %v1061 = vadd.f32 %v1057, %v1059
    %v1062 = vadd.f32 %v1058, %v1060
    %v1063 = vmax.f32 %v1061, 0.0
    %v1064 = vmax.f32 %v1062, 0.0
    %1065 = vst [vmem:[%s9] sm:$0xff] %v1063
    %1066 = vst [vmem:[%s9 + $0x8] sm:$0xff] %v1064
    // Predicated region
    $region42: #{residual_block.1} parent=1 // pred_check
      _
    $region43: #{residual_block.1} parent=1 // pred_check_branch
      %1068 = sbr.rel (0) target = $region45
    $region44: #{residual_block.1} parent=1 // pred_region
      _
    $region45: #{residual_block.1} parent=1 // pred_fallthru
      _
    // Predicated region
    $region46: #{residual_block.1} parent=1 // pred_check
      _
    $region47: #{residual_block.1} parent=1 // pred_check_branch
      %1070 = sbr.rel (0) target = $region49
    $region48: #{residual_block.1} parent=1 // pred_region
      _
    $region49: #{residual_block.1} parent=1 // pred_fallthru
      _
    %1071 = vsyncpa [#allocation6], 1

</llo_original>
